<compile_context>
chip_gen: v7x
topology: tpu7x:2x2x1
jax: 0.10.0
libtpu: 0.0.40
codegen_flags: <defaults>
</compile_context>

<pallas_src>
import functools

import jax
import jax.numpy as jnp
import numpy as np
from jax.experimental import pallas as pl
from jax.experimental.pallas import tpu as pltpu


def _conv3x3_gn_kernel(x_ref, w_ref, b_ref, gamma_ref, beta_ref,
                       o_ref, xs_ref, col_ref, *, stride, num_groups, eps):
    """One batch element per grid step.

    x_ref:     (1, H, W, Cin)      unpadded input tile (conv_dtype)
    w_ref:     (9*Cin, Cout)       conv weight, im2col layout (conv_dtype)
    b_ref:     (1, Cout)           conv bias (f32)
    gamma_ref: (1, Cout)           GroupNorm weight (f32)
    beta_ref:  (1, Cout)           GroupNorm bias (f32)
    o_ref:     (1, Ho, Wo, Cout)   output (f32)
    xs_ref:    (H+2, W+2, Cin)     VMEM scratch, zero-padded input
    col_ref:   (Ho*Wo, 9*Cin)      VMEM scratch, im2col patch matrix
    """
    _, H, W, Cin = x_ref.shape
    _, Ho, Wo, Cout = o_ref.shape

    # ---- in-kernel zero padding (padding=1) ----
    # Full zero then interior copy: trivially correct for any grid semantics
    # (scratch is uninitialized / reused across steps); halo-only zeroing
    # would also work but saves very little.
    xs_ref[...] = jnp.zeros_like(xs_ref)
    xs_ref[1:H + 1, 1:W + 1, :] = x_ref[0]
    xs = xs_ref[...]

    # ---- build the im2col buffer once: (Ho*Wo, 9*Cin) ----
    for kh in range(3):
        for kw in range(3):
            t = kh * 3 + kw
            patch = xs[kh: kh + (Ho - 1) * stride + 1: stride,
                       kw: kw + (Wo - 1) * stride + 1: stride, :]
            col_ref[:, t * Cin:(t + 1) * Cin] = patch.reshape(Ho * Wo, Cin)

    # ---- single MXU matmul, f32 accumulation ----
    acc = jnp.dot(col_ref[...], w_ref[...],
                  preferred_element_type=jnp.float32)        # (Ho*Wo, Cout)
    acc = acc + b_ref[...]                                    # bias broadcast

    # ---- GroupNorm over (H, W, channels-in-group), per sample ----
    # Group stats via VPU reductions + masked selects (no MXU, no gmat).
    cpg = Cout // num_groups
    count = float((Ho * Wo) * cpg)

    s1 = jnp.sum(acc, axis=0, keepdims=True)                  # (1, Cout)
    s2 = jnp.sum(acc * acc, axis=0, keepdims=True)            # (1, Cout)

    lane = jax.lax.broadcasted_iota(jnp.int32, (1, Cout), 1)
    mean_c = jnp.zeros((1, Cout), jnp.float32)
    meansq_c = jnp.zeros((1, Cout), jnp.float32)
    for g in range(num_groups):
        in_g = (lane >= g * cpg) & (lane < (g + 1) * cpg)
        g_mean = jnp.sum(jnp.where(in_g, s1, 0.0)) / count
        g_meansq = jnp.sum(jnp.where(in_g, s2, 0.0)) / count
        mean_c = jnp.where(in_g, g_mean, mean_c)
        meansq_c = jnp.where(in_g, g_meansq, meansq_c)

    # clamp: E[x^2]-E[x]^2 can go slightly negative in f32.
    var_c = jnp.maximum(meansq_c - mean_c * mean_c, 0.0)
    inv_c = jax.lax.rsqrt(var_c + eps)

    y = (acc - mean_c) * (inv_c * gamma_ref[...]) + beta_ref[...]
    o_ref[...] = y.reshape(1, Ho, Wo, Cout).astype(o_ref.dtype)


def conv3x3_norm(x_nchw, weight_oihw, bias, gamma, beta, *,
                 stride=1, num_groups=2, eps=1e-5,
                 conv_dtype=jnp.float32):
    """Conv3x3(pad=1, stride) + GroupNorm. PyTorch NCHW in / NCHW out.

    conv_dtype: dtype of the MXU operands (input activations / weights).
      float32 matches the PyTorch module exactly; jnp.bfloat16 halves HBM/VMEM
      traffic and doubles MXU throughput on v6e/v7x (f32 accumulation and f32
      GroupNorm are kept either way).
    """
    x_nchw = x_nchw.astype(jnp.float32)
    N, Cin, H, W = x_nchw.shape
    Cout = weight_oihw.shape[0]
    Hp, Wp = H + 2, W + 2
    Ho = (H + 2 - 3) // stride + 1
    Wo = (W + 2 - 3) // stride + 1

    # glue: NCHW -> NHWC (channels on lanes; dense for real DyHead C=256).
    x = jnp.transpose(x_nchw, (0, 2, 3, 1)).astype(conv_dtype)
    # OIHW -> HWIO -> (9*Cin, Cout): row index = (kh*3 + kw)*Cin + ci,
    # matching the im2col column layout built inside the kernel.
    w2d = (jnp.transpose(weight_oihw, (2, 3, 1, 0))
           .reshape(9 * Cin, Cout).astype(conv_dtype))
    b = bias.reshape(1, Cout).astype(jnp.float32)
    g = gamma.reshape(1, Cout).astype(jnp.float32)
    bt = beta.reshape(1, Cout).astype(jnp.float32)

    kernel = functools.partial(_conv3x3_gn_kernel, stride=stride,
                               num_groups=num_groups, eps=eps)

    out_nhwc = pl.pallas_call(
        kernel,
        out_shape=jax.ShapeDtypeStruct((N, Ho, Wo, Cout), jnp.float32),
        grid_spec=pltpu.PrefetchScalarGridSpec(
            num_scalar_prefetch=0,
            grid=(N,),
            in_specs=[
                pl.BlockSpec((1, H, W, Cin), lambda n: (n, 0, 0, 0)),
                pl.BlockSpec((9 * Cin, Cout), lambda n: (0, 0)),
                pl.BlockSpec((1, Cout), lambda n: (0, 0)),
                pl.BlockSpec((1, Cout), lambda n: (0, 0)),
                pl.BlockSpec((1, Cout), lambda n: (0, 0)),
            ],
            out_specs=pl.BlockSpec((1, Ho, Wo, Cout), lambda n: (n, 0, 0, 0)),
            scratch_shapes=[
                pltpu.VMEM((Hp, Wp, Cin), conv_dtype),          # padded input
                pltpu.VMEM((Ho * Wo, 9 * Cin), conv_dtype),     # im2col buffer
            ],
        ),
        compiler_params=pltpu.CompilerParams(
            # batch axis is parallel: feeds both TensorCores on v7x when N>=2.
            dimension_semantics=("parallel",)),
    )(x, w2d, b, g, bt)

    # glue: NHWC -> NCHW
    return jnp.transpose(out_nhwc, (0, 3, 1, 2))


def _reference(x_nchw, weight_oihw, bias, gamma, beta, stride, num_groups, eps):
    """Pure-JAX reference (conv + GroupNorm), for correctness checking."""
    y = jax.lax.conv_general_dilated(
        x_nchw, weight_oihw, window_strides=(stride, stride),
        padding=((1, 1), (1, 1)),
        dimension_numbers=("NCHW", "OIHW", "NCHW"))
    y = y + bias[None, :, None, None]
    N, C, H, W = y.shape
    yg = y.reshape(N, num_groups, C // num_groups, H, W)
    mean = yg.mean(axis=(2, 3, 4), keepdims=True)
    var = ((yg - mean) ** 2).mean(axis=(2, 3, 4), keepdims=True)
    yn = ((yg - mean) / jnp.sqrt(var + eps)).reshape(N, C, H, W)
    return yn * gamma[None, :, None, None] + beta[None, :, None, None]


if __name__ == "__main__":
    # Small shapes consistent with the module: N=2, Cin=4, Cout=8, H=W=16,
    # stride=1, bn_type=('gn', 2).
    N, Cin, Cout, H, W = 2, 4, 8, 16, 16
    stride, num_groups, eps = 1, 2, 1e-5

    key = jax.random.PRNGKey(0)
    kx, kw, kb, kg, kbt = jax.random.split(key, 5)
    x = jax.random.normal(kx, (N, Cin, H, W), dtype=jnp.float32)
    weight = jax.random.normal(kw, (Cout, Cin, 3, 3), dtype=jnp.float32) * 0.1
    bias = jax.random.normal(kb, (Cout,), dtype=jnp.float32) * 0.1
    gamma = 1.0 + 0.1 * jax.random.normal(kg, (Cout,), dtype=jnp.float32)
    beta = 0.1 * jax.random.normal(kbt, (Cout,), dtype=jnp.float32)

    out = conv3x3_norm(x, weight, bias, gamma, beta,
                       stride=stride, num_groups=num_groups, eps=eps)
    out = jax.block_until_ready(out)

    ref = _reference(x, weight, bias, gamma, beta, stride, num_groups, eps)
    np.testing.assert_allclose(np.asarray(out), np.asarray(ref),
                               rtol=1e-4, atol=1e-4)
    print("KERNEL_OK")
</pallas_src>

<mosaic_0001>
module attributes {stable_mosaic.version = 11 : i64} {
  func.func @_conv3x3_gn_kernel(%arg0: i32, %arg1: memref<1x16x16x4xf32, #tpu.memory_space<vmem>>, %arg2: memref<36x8xf32, #tpu.memory_space<vmem>>, %arg3: memref<1x8xf32, #tpu.memory_space<vmem>>, %arg4: memref<1x8xf32, #tpu.memory_space<vmem>>, %arg5: memref<1x8xf32, #tpu.memory_space<vmem>>, %arg6: memref<1x16x16x8xf32, #tpu.memory_space<vmem>>, %arg7: memref<18x18x4xf32, #tpu.memory_space<vmem>>, %arg8: memref<256x36xf32, #tpu.memory_space<vmem>>) attributes {dimension_semantics = [#tpu.dimension_semantics<parallel>], iteration_bounds = array<i64: 2>, scalar_prefetch = 0 : i64, scratch_operands = 2 : i64, tpu.core_type = #tpu.core_type<tc>, window_params = [{transform_indices = @transform_0, window_bounds = array<i64: 1, 16, 16, 4>}, {pipeline_mode = #tpu.pipeline_mode<synchronous>, transform_indices = @transform_1, window_bounds = array<i64: 36, 8>}, {pipeline_mode = #tpu.pipeline_mode<synchronous>, transform_indices = @transform_2, window_bounds = array<i64: 1, 8>}, {pipeline_mode = #tpu.pipeline_mode<synchronous>, transform_indices = @transform_3, window_bounds = array<i64: 1, 8>}, {pipeline_mode = #tpu.pipeline_mode<synchronous>, transform_indices = @transform_4, window_bounds = array<i64: 1, 8>}, {transform_indices = @transform_5, window_bounds = array<i64: 1, 16, 16, 8>}]} {
    %cst = arith.constant 0.000000e+00 : f32
    %0 = vector.broadcast %cst : f32 to vector<18x18x4xf32>
    %c0 = arith.constant 0 : index
    %c0_0 = arith.constant 0 : index
    %c0_1 = arith.constant 0 : index
    %1 = vector.load %arg7[%c0, %c0_0, %c0_1] : memref<18x18x4xf32, #tpu.memory_space<vmem>>, vector<18x18x4xf32>
    tpu.vector_store %arg7[%c0, %c0_0, %c0_1], %0 {strides = array<i32>} : memref<18x18x4xf32, #tpu.memory_space<vmem>>, vector<18x18x4xf32>,
    %c0_2 = arith.constant 0 : index
    %c0_3 = arith.constant 0 : index
    %c0_4 = arith.constant 0 : index
    %c0_5 = arith.constant 0 : index
    %2 = vector.load %arg1[%c0_2, %c0_3, %c0_4, %c0_5] : memref<1x16x16x4xf32, #tpu.memory_space<vmem>>, vector<1x16x16x4xf32>
    %3 = vector.shape_cast %2 : vector<1x16x16x4xf32> to vector<16x16x4xf32>
    %c1 = arith.constant 1 : index
    %c1_6 = arith.constant 1 : index
    %c0_7 = arith.constant 0 : index
    %4 = vector.load %arg7[%c1, %c1_6, %c0_7] : memref<18x18x4xf32, #tpu.memory_space<vmem>>, vector<16x16x4xf32>
    tpu.vector_store %arg7[%c1, %c1_6, %c0_7], %3 {strides = array<i32>} : memref<18x18x4xf32, #tpu.memory_space<vmem>>, vector<16x16x4xf32>,
    %c0_8 = arith.constant 0 : index
    %c0_9 = arith.constant 0 : index
    %c0_10 = arith.constant 0 : index
    %5 = vector.load %arg7[%c0_8, %c0_9, %c0_10] : memref<18x18x4xf32, #tpu.memory_space<vmem>>, vector<18x18x4xf32>
    %6 = vector.extract_strided_slice %5 {offsets = [0, 0, 0], sizes = [16, 16, 4], strides = [1, 1, 1]} : vector<18x18x4xf32> to vector<16x16x4xf32>
    %7 = vector.shape_cast %6 : vector<16x16x4xf32> to vector<256x4xf32>
    %c0_11 = arith.constant 0 : index
    %c0_12 = arith.constant 0 : index
    %8 = vector.load %arg8[%c0_11, %c0_12] : memref<256x36xf32, #tpu.memory_space<vmem>>, vector<256x4xf32>
    tpu.vector_store %arg8[%c0_11, %c0_12], %7 {strides = array<i32>} : memref<256x36xf32, #tpu.memory_space<vmem>>, vector<256x4xf32>,
    %9 = vector.extract_strided_slice %5 {offsets = [0, 1, 0], sizes = [16, 16, 4], strides = [1, 1, 1]} : vector<18x18x4xf32> to vector<16x16x4xf32>
    %10 = vector.shape_cast %9 : vector<16x16x4xf32> to vector<256x4xf32>
    %c0_13 = arith.constant 0 : index
    %c4 = arith.constant 4 : index
    %11 = vector.load %arg8[%c0_13, %c4] : memref<256x36xf32, #tpu.memory_space<vmem>>, vector<256x4xf32>
    tpu.vector_store %arg8[%c0_13, %c4], %10 {strides = array<i32>} : memref<256x36xf32, #tpu.memory_space<vmem>>, vector<256x4xf32>,
    %12 = vector.extract_strided_slice %5 {offsets = [0, 2, 0], sizes = [16, 16, 4], strides = [1, 1, 1]} : vector<18x18x4xf32> to vector<16x16x4xf32>
    %13 = vector.shape_cast %12 : vector<16x16x4xf32> to vector<256x4xf32>
    %c0_14 = arith.constant 0 : index
    %c8 = arith.constant 8 : index
    %14 = vector.load %arg8[%c0_14, %c8] : memref<256x36xf32, #tpu.memory_space<vmem>>, vector<256x4xf32>
    tpu.vector_store %arg8[%c0_14, %c8], %13 {strides = array<i32>} : memref<256x36xf32, #tpu.memory_space<vmem>>, vector<256x4xf32>,
    %15 = vector.extract_strided_slice %5 {offsets = [1, 0, 0], sizes = [16, 16, 4], strides = [1, 1, 1]} : vector<18x18x4xf32> to vector<16x16x4xf32>
    %16 = vector.shape_cast %15 : vector<16x16x4xf32> to vector<256x4xf32>
    %c0_15 = arith.constant 0 : index
    %c12 = arith.constant 12 : index
    %17 = vector.load %arg8[%c0_15, %c12] : memref<256x36xf32, #tpu.memory_space<vmem>>, vector<256x4xf32>
    tpu.vector_store %arg8[%c0_15, %c12], %16 {strides = array<i32>} : memref<256x36xf32, #tpu.memory_space<vmem>>, vector<256x4xf32>,
    %18 = vector.extract_strided_slice %5 {offsets = [1, 1, 0], sizes = [16, 16, 4], strides = [1, 1, 1]} : vector<18x18x4xf32> to vector<16x16x4xf32>
    %19 = vector.shape_cast %18 : vector<16x16x4xf32> to vector<256x4xf32>
    %c0_16 = arith.constant 0 : index
    %c16 = arith.constant 16 : index
    %20 = vector.load %arg8[%c0_16, %c16] : memref<256x36xf32, #tpu.memory_space<vmem>>, vector<256x4xf32>
    tpu.vector_store %arg8[%c0_16, %c16], %19 {strides = array<i32>} : memref<256x36xf32, #tpu.memory_space<vmem>>, vector<256x4xf32>,
    %21 = vector.extract_strided_slice %5 {offsets = [1, 2, 0], sizes = [16, 16, 4], strides = [1, 1, 1]} : vector<18x18x4xf32> to vector<16x16x4xf32>
    %22 = vector.shape_cast %21 : vector<16x16x4xf32> to vector<256x4xf32>
    %c0_17 = arith.constant 0 : index
    %c20 = arith.constant 20 : index
    %23 = vector.load %arg8[%c0_17, %c20] : memref<256x36xf32, #tpu.memory_space<vmem>>, vector<256x4xf32>
    tpu.vector_store %arg8[%c0_17, %c20], %22 {strides = array<i32>} : memref<256x36xf32, #tpu.memory_space<vmem>>, vector<256x4xf32>,
    %24 = vector.extract_strided_slice %5 {offsets = [2, 0, 0], sizes = [16, 16, 4], strides = [1, 1, 1]} : vector<18x18x4xf32> to vector<16x16x4xf32>
    %25 = vector.shape_cast %24 : vector<16x16x4xf32> to vector<256x4xf32>
    %c0_18 = arith.constant 0 : index
    %c24 = arith.constant 24 : index
    %26 = vector.load %arg8[%c0_18, %c24] : memref<256x36xf32, #tpu.memory_space<vmem>>, vector<256x4xf32>
    tpu.vector_store %arg8[%c0_18, %c24], %25 {strides = array<i32>} : memref<256x36xf32, #tpu.memory_space<vmem>>, vector<256x4xf32>,
    %27 = vector.extract_strided_slice %5 {offsets = [2, 1, 0], sizes = [16, 16, 4], strides = [1, 1, 1]} : vector<18x18x4xf32> to vector<16x16x4xf32>
    %28 = vector.shape_cast %27 : vector<16x16x4xf32> to vector<256x4xf32>
    %c0_19 = arith.constant 0 : index
    %c28 = arith.constant 28 : index
    %29 = vector.load %arg8[%c0_19, %c28] : memref<256x36xf32, #tpu.memory_space<vmem>>, vector<256x4xf32>
    tpu.vector_store %arg8[%c0_19, %c28], %28 {strides = array<i32>} : memref<256x36xf32, #tpu.memory_space<vmem>>, vector<256x4xf32>,
    %30 = vector.extract_strided_slice %5 {offsets = [2, 2, 0], sizes = [16, 16, 4], strides = [1, 1, 1]} : vector<18x18x4xf32> to vector<16x16x4xf32>
    %31 = vector.shape_cast %30 : vector<16x16x4xf32> to vector<256x4xf32>
    %c0_20 = arith.constant 0 : index
    %c32 = arith.constant 32 : index
    %32 = vector.load %arg8[%c0_20, %c32] : memref<256x36xf32, #tpu.memory_space<vmem>>, vector<256x4xf32>
    tpu.vector_store %arg8[%c0_20, %c32], %31 {strides = array<i32>} : memref<256x36xf32, #tpu.memory_space<vmem>>, vector<256x4xf32>,
    %c0_21 = arith.constant 0 : index
    %c0_22 = arith.constant 0 : index
    %33 = vector.load %arg8[%c0_21, %c0_22] : memref<256x36xf32, #tpu.memory_space<vmem>>, vector<256x36xf32>
    %c0_23 = arith.constant 0 : index
    %c0_24 = arith.constant 0 : index
    %34 = vector.load %arg2[%c0_23, %c0_24] : memref<36x8xf32, #tpu.memory_space<vmem>>, vector<36x8xf32>
    %cst_25 = arith.constant dense<0.000000e+00> : vector<256x8xf32>
    %35 = tpu.matmul %33, %34, %cst_25 {dimension_numbers = #tpu.dot_dimension_numbers<[1], [0], [0], [1], [0, 0, 1, 1], [], []>} : vector<256x36xf32>, vector<36x8xf32>, vector<256x8xf32> -> vector<256x8xf32>
    %c0_26 = arith.constant 0 : index
    %c0_27 = arith.constant 0 : index
    %36 = vector.load %arg3[%c0_26, %c0_27] : memref<1x8xf32, #tpu.memory_space<vmem>>, vector<1x8xf32>
    %37 = vector.broadcast %36 : vector<1x8xf32> to vector<256x8xf32>
    %38 = arith.addf %35, %37 : vector<256x8xf32>
    %cst_28 = arith.constant dense<0.000000e+00> : vector<8xf32>
    %39 = vector.multi_reduction <add>, %38, %cst_28 [0] : vector<256x8xf32> to vector<8xf32>
    %40 = vector.shape_cast %39 : vector<8xf32> to vector<1x8xf32>
    %41 = arith.mulf %38, %38 : vector<256x8xf32>
    %cst_29 = arith.constant dense<0.000000e+00> : vector<8xf32>
    %42 = vector.multi_reduction <add>, %41, %cst_29 [0] : vector<256x8xf32> to vector<8xf32>
    %43 = vector.shape_cast %42 : vector<8xf32> to vector<1x8xf32>
    %44 = tpu.iota {dimensions = array<i32: 1>} : vector<1x8xi32>
    %cst_30 = arith.constant 0.000000e+00 : f32
    %45 = vector.broadcast %cst_30 : f32 to vector<1x8xf32>
    %cst_31 = arith.constant 0.000000e+00 : f32
    %46 = vector.broadcast %cst_31 : f32 to vector<1x8xf32>
    %c0_i32 = arith.constant 0 : i32
    %47 = vector.broadcast %c0_i32 : i32 to vector<1x8xi32>
    %48 = arith.cmpi sge, %44, %47 : vector<1x8xi32>
    %c4_i32 = arith.constant 4 : i32
    %49 = vector.broadcast %c4_i32 : i32 to vector<1x8xi32>
    %50 = arith.cmpi slt, %44, %49 : vector<1x8xi32>
    %51 = arith.andi %48, %50 : vector<1x8xi1>
    %cst_32 = arith.constant 0.000000e+00 : f32
    %52 = vector.broadcast %cst_32 : f32 to vector<1x8xf32>
    %53 = arith.select %51, %40, %52 : vector<1x8xi1>, vector<1x8xf32>
    %54 = vector.shape_cast %53 : vector<1x8xf32> to vector<1x1x8xf32>
    %cst_33 = arith.constant dense<0.000000e+00> : vector<1xf32>
    %55 = vector.multi_reduction <add>, %54, %cst_33 [1, 2] : vector<1x1x8xf32> to vector<1xf32>
    %56 = vector.shape_cast %55 : vector<1xf32> to vector<1x1x1xf32>
    %57 = vector.extract %56[0, 0, 0] : f32 from vector<1x1x1xf32>
    %cst_34 = arith.constant 1.024000e+03 : f32
    %58 = arith.divf %57, %cst_34 : f32
    %cst_35 = arith.constant 0.000000e+00 : f32
    %59 = vector.broadcast %cst_35 : f32 to vector<1x8xf32>
    %60 = arith.select %51, %43, %59 : vector<1x8xi1>, vector<1x8xf32>
    %61 = vector.shape_cast %60 : vector<1x8xf32> to vector<1x1x8xf32>
    %cst_36 = arith.constant dense<0.000000e+00> : vector<1xf32>
    %62 = vector.multi_reduction <add>, %61, %cst_36 [1, 2] : vector<1x1x8xf32> to vector<1xf32>
    %63 = vector.shape_cast %62 : vector<1xf32> to vector<1x1x1xf32>
    %64 = vector.extract %63[0, 0, 0] : f32 from vector<1x1x1xf32>
    %cst_37 = arith.constant 1.024000e+03 : f32
    %65 = arith.divf %64, %cst_37 : f32
    %66 = vector.broadcast %58 : f32 to vector<1x8xf32>
    %67 = arith.select %51, %66, %45 : vector<1x8xi1>, vector<1x8xf32>
    %68 = vector.broadcast %65 : f32 to vector<1x8xf32>
    %69 = arith.select %51, %68, %46 : vector<1x8xi1>, vector<1x8xf32>
    %c4_i32_38 = arith.constant 4 : i32
    %70 = vector.broadcast %c4_i32_38 : i32 to vector<1x8xi32>
    %71 = arith.cmpi sge, %44, %70 : vector<1x8xi32>
    %c8_i32 = arith.constant 8 : i32
    %72 = vector.broadcast %c8_i32 : i32 to vector<1x8xi32>
    %73 = arith.cmpi slt, %44, %72 : vector<1x8xi32>
    %74 = arith.andi %71, %73 : vector<1x8xi1>
    %cst_39 = arith.constant 0.000000e+00 : f32
    %75 = vector.broadcast %cst_39 : f32 to vector<1x8xf32>
    %76 = arith.select %74, %40, %75 : vector<1x8xi1>, vector<1x8xf32>
    %77 = vector.shape_cast %76 : vector<1x8xf32> to vector<1x1x8xf32>
    %cst_40 = arith.constant dense<0.000000e+00> : vector<1xf32>
    %78 = vector.multi_reduction <add>, %77, %cst_40 [1, 2] : vector<1x1x8xf32> to vector<1xf32>
    %79 = vector.shape_cast %78 : vector<1xf32> to vector<1x1x1xf32>
    %80 = vector.extract %79[0, 0, 0] : f32 from vector<1x1x1xf32>
    %cst_41 = arith.constant 1.024000e+03 : f32
    %81 = arith.divf %80, %cst_41 : f32
    %cst_42 = arith.constant 0.000000e+00 : f32
    %82 = vector.broadcast %cst_42 : f32 to vector<1x8xf32>
    %83 = arith.select %74, %43, %82 : vector<1x8xi1>, vector<1x8xf32>
    %84 = vector.shape_cast %83 : vector<1x8xf32> to vector<1x1x8xf32>
    %cst_43 = arith.constant dense<0.000000e+00> : vector<1xf32>
    %85 = vector.multi_reduction <add>, %84, %cst_43 [1, 2] : vector<1x1x8xf32> to vector<1xf32>
    %86 = vector.shape_cast %85 : vector<1xf32> to vector<1x1x1xf32>
    %87 = vector.extract %86[0, 0, 0] : f32 from vector<1x1x1xf32>
    %cst_44 = arith.constant 1.024000e+03 : f32
    %88 = arith.divf %87, %cst_44 : f32
    %89 = vector.broadcast %81 : f32 to vector<1x8xf32>
    %90 = arith.select %74, %89, %67 : vector<1x8xi1>, vector<1x8xf32>
    %91 = vector.broadcast %88 : f32 to vector<1x8xf32>
    %92 = arith.select %74, %91, %69 : vector<1x8xi1>, vector<1x8xf32>
    %93 = arith.mulf %90, %90 : vector<1x8xf32>
    %94 = arith.subf %92, %93 : vector<1x8xf32>
    %cst_45 = arith.constant 0.000000e+00 : f32
    %95 = vector.broadcast %cst_45 : f32 to vector<1x8xf32>
    %96 = arith.maximumf %94, %95 : vector<1x8xf32>
    %cst_46 = arith.constant 9.99999974E-6 : f32
    %97 = vector.broadcast %cst_46 : f32 to vector<1x8xf32>
    %98 = arith.addf %96, %97 : vector<1x8xf32>
    %99 = math.rsqrt %98 : vector<1x8xf32>
    %100 = vector.broadcast %90 : vector<1x8xf32> to vector<256x8xf32>
    %101 = arith.subf %38, %100 : vector<256x8xf32>
    %c0_47 = arith.constant 0 : index
    %c0_48 = arith.constant 0 : index
    %102 = vector.load %arg4[%c0_47, %c0_48] : memref<1x8xf32, #tpu.memory_space<vmem>>, vector<1x8xf32>
    %103 = arith.mulf %99, %102 : vector<1x8xf32>
    %104 = vector.broadcast %103 : vector<1x8xf32> to vector<256x8xf32>
    %105 = arith.mulf %101, %104 : vector<256x8xf32>
    %c0_49 = arith.constant 0 : index
    %c0_50 = arith.constant 0 : index
    %106 = vector.load %arg5[%c0_49, %c0_50] : memref<1x8xf32, #tpu.memory_space<vmem>>, vector<1x8xf32>
    %107 = vector.broadcast %106 : vector<1x8xf32> to vector<256x8xf32>
    %108 = arith.addf %105, %107 : vector<256x8xf32>
    %109 = vector.shape_cast %108 : vector<256x8xf32> to vector<1x16x16x8xf32>
    %c0_51 = arith.constant 0 : index
    %c0_52 = arith.constant 0 : index
    %c0_53 = arith.constant 0 : index
    %c0_54 = arith.constant 0 : index
    %110 = vector.load %arg6[%c0_51, %c0_52, %c0_53, %c0_54] : memref<1x16x16x8xf32, #tpu.memory_space<vmem>>, vector<1x16x16x8xf32>
    tpu.vector_store %arg6[%c0_51, %c0_52, %c0_53, %c0_54], %109 {strides = array<i32>} : memref<1x16x16x8xf32, #tpu.memory_space<vmem>>, vector<1x16x16x8xf32>,
    return
  }
  func.func @transform_0(%arg0: i32) -> (i32, i32, i32, i32) {
    %c0_i32 = arith.constant 0 : i32
    %c0_i32_0 = arith.constant 0 : i32
    %c0_i32_1 = arith.constant 0 : i32
    %c0_i32_2 = arith.constant 0 : i32
    return %arg0, %c0_i32, %c0_i32_0, %c0_i32_1 : i32, i32, i32, i32
  }
  func.func @transform_1(%arg0: i32) -> (i32, i32) {
    %c0_i32 = arith.constant 0 : i32
    %c0_i32_0 = arith.constant 0 : i32
    %c0_i32_1 = arith.constant 0 : i32
    return %c0_i32, %c0_i32_0 : i32, i32
  }
  func.func @transform_2(%arg0: i32) -> (i32, i32) {
    %c0_i32 = arith.constant 0 : i32
    %c0_i32_0 = arith.constant 0 : i32
    %c0_i32_1 = arith.constant 0 : i32
    return %c0_i32, %c0_i32_0 : i32, i32
  }
  func.func @transform_3(%arg0: i32) -> (i32, i32) {
    %c0_i32 = arith.constant 0 : i32
    %c0_i32_0 = arith.constant 0 : i32
    %c0_i32_1 = arith.constant 0 : i32
    return %c0_i32, %c0_i32_0 : i32, i32
  }
  func.func @transform_4(%arg0: i32) -> (i32, i32) {
    %c0_i32 = arith.constant 0 : i32
    %c0_i32_0 = arith.constant 0 : i32
    %c0_i32_1 = arith.constant 0 : i32
    return %c0_i32, %c0_i32_0 : i32, i32
  }
  func.func @transform_5(%arg0: i32) -> (i32, i32, i32, i32) {
    %c0_i32 = arith.constant 0 : i32
    %c0_i32_0 = arith.constant 0 : i32
    %c0_i32_1 = arith.constant 0 : i32
    %c0_i32_2 = arith.constant 0 : i32
    return %arg0, %c0_i32, %c0_i32_0, %c0_i32_1 : i32, i32, i32, i32
  }
}

</mosaic_0001>

<llo_original>
// kernel: tpu_custom_call.1
$region0: #{tpu_custom_call.1}
  #allocation0 [shape = 'u32[]', space=smem, size = 0x4, offset = 0x4, fixed_abs, tag = 'smem constant byte address 0x4 - core index']
  #allocation1 [shape = 'u32[144,128]{1,0:T(1,128)}', space=vmem, size = 0x12000, scoped, tag = 'internal scratch']
  #allocation2 [shape = 'f32[18,18,4]{2,1,0:T(8,128)}', space=vmem, size = 0x36000, scoped, tag = 'scratch operand']
  #allocation3 [shape = 'f32[256,36]{1,0:T(8,128)}', space=vmem, size = 0x20000, scoped, tag = 'scratch operand']
  %s0 = inlined_call_operand.vmem [shape: f32[2,16,16,4], index: 0, kind: input, shape index: {}]
  %s1 = inlined_call_operand.vmem [shape: f32[36,8], index: 1, kind: input, shape index: {}]
  %s2 = inlined_call_operand.vmem [shape: f32[1,8], index: 2, kind: input, shape index: {}]
  %s3 = inlined_call_operand.vmem [shape: f32[1,8], index: 3, kind: input, shape index: {}]
  %s4 = inlined_call_operand.vmem [shape: f32[1,8], index: 4, kind: input, shape index: {}]
  %s5 = inlined_call_operand.vmem [shape: f32[2,16,16,8], index: 5, kind: output, shape index: {}]
  %s6 = sld [smem:[#allocation0]]
  $region53: #{tpu_custom_call.1} parent=0
    _
  %s8 = ssub.s32 1, %s6
  %s9 = scalar_select 0, %s8, %s6
  loop: start=0, step=1, limit=4
  $region2: #{tpu_custom_call.1} parent=0 // loop_pre_header
    _
  $region3: #{tpu_custom_call.1} parent=0 // loop_header
    %s11 = sphi 0, %s15
    %p12 = scmp.ge.s32.totalorder %s11, 4
    %s21 = sphi 0, %s23
    %s24 = sphi 0, %s21
    %s25 = sphi 0, %s24
    %s41 = sphi 0, %s25
    %s45 = sphi 0, %s45
    %s47 = sphi 0, %s45
    %s48 = sphi 0, %s47
    %s62 = sphi 0, %s48
    %s66 = sphi 0, %s66
    %s68 = sphi 0, %s66
    %s69 = sphi 0, %s68
    %s83 = sphi 0, %s69
    %s87 = sphi 0, %s87
    %s89 = sphi 0, %s87
    %s90 = sphi 0, %s89
    %s104 = sphi 0, %s90
    %s108 = sphi 0, %s108
    %s110 = sphi 0, %s108
    %s111 = sphi 0, %s110
    %s125 = sphi 0, %s111
    %s131 = sphi 0, %s133
    %s134 = sphi 0, %s131
    %s135 = sphi 0, %s134
    %s151 = sphi 0, %s135
  $region4: #{tpu_custom_call.1} parent=0 // loop_header_branch
    %14 = sbr.rel (%p12) target = $region8
  $region5: #{tpu_custom_call.1} parent=0 // loop_body
    %s16 = ssub.s32 %s11, 1
    %s17 = ssub.s32 %s11, 2
    %s18 = sadd.s32 %s11, 1
    %s19 = ssub.s32 %s11, %s18
    %p20 = scmp.eq.s32.totalorder %s19, 0
    %s22 = sadd.s32 %s21, 1
    %s23 = scalar_select %p20, %s21, %s22
    %p26 = pneg %p20
    %p27 = scmp.eq.s32.totalorder %s11, 1
    %p28 = por %p26, %p27
    %p29 = scmp.ne.s32.totalorder %s21, %s24
    %p30 = scmp.eq.s32.totalorder %s11, 0
    %p31 = por %p29, %p30
    %p32 = scmp.ne.s32.totalorder %s21, %s24
    %p33 = scmp.eq.s32.totalorder %s16, 1
    %p34 = por %p32, %p33
    %p35 = scmp.ne.s32.totalorder %s24, %s25
    %p36 = scmp.eq.s32.totalorder %s16, 0
    %p37 = por %p35, %p36
    %p38 = scmp.ne.s32.totalorder %s24, %s25
    %p39 = scmp.eq.s32.totalorder %s17, 1
    %p40 = por %p38, %p39
    %p42 = scmp.ne.s32.totalorder %s25, %s41
    %p43 = scmp.eq.s32.totalorder %s17, 0
    %p44 = por %p42, %p43
    %s46 = sadd.s32 %s45, 1
    %p49 = scmp.eq.s32.totalorder %s11, 1
    %p50 = scmp.ne.s32.totalorder %s45, %s47
    %p51 = scmp.eq.s32.totalorder %s11, 0
    %p52 = por %p50, %p51
    %p53 = scmp.ne.s32.totalorder %s45, %s47
    %p54 = scmp.eq.s32.totalorder %s16, 1
    %p55 = por %p53, %p54
    %p56 = scmp.ne.s32.totalorder %s47, %s48
    %p57 = scmp.eq.s32.totalorder %s16, 0
    %p58 = por %p56, %p57
    %p59 = scmp.ne.s32.totalorder %s47, %s48
    %p60 = scmp.eq.s32.totalorder %s17, 1
    %p61 = por %p59, %p60
    %p63 = scmp.ne.s32.totalorder %s48, %s62
    %p64 = scmp.eq.s32.totalorder %s17, 0
    %p65 = por %p63, %p64
    %s67 = sadd.s32 %s66, 1
    %p70 = scmp.eq.s32.totalorder %s11, 1
    %p71 = scmp.ne.s32.totalorder %s66, %s68
    %p72 = scmp.eq.s32.totalorder %s11, 0
    %p73 = por %p71, %p72
    %p74 = scmp.ne.s32.totalorder %s66, %s68
    %p75 = scmp.eq.s32.totalorder %s16, 1
    %p76 = por %p74, %p75
    %p77 = scmp.ne.s32.totalorder %s68, %s69
    %p78 = scmp.eq.s32.totalorder %s16, 0
    %p79 = por %p77, %p78
    %p80 = scmp.ne.s32.totalorder %s68, %s69
    %p81 = scmp.eq.s32.totalorder %s17, 1
    %p82 = por %p80, %p81
    %p84 = scmp.ne.s32.totalorder %s69, %s83
    %p85 = scmp.eq.s32.totalorder %s17, 0
    %p86 = por %p84, %p85
    %s88 = sadd.s32 %s87, 1
    %p91 = scmp.eq.s32.totalorder %s11, 1
    %p92 = scmp.ne.s32.totalorder %s87, %s89
    %p93 = scmp.eq.s32.totalorder %s11, 0
    %p94 = por %p92, %p93
    %p95 = scmp.ne.s32.totalorder %s87, %s89
    %p96 = scmp.eq.s32.totalorder %s16, 1
    %p97 = por %p95, %p96
    %p98 = scmp.ne.s32.totalorder %s89, %s90
    %p99 = scmp.eq.s32.totalorder %s16, 0
    %p100 = por %p98, %p99
    %p101 = scmp.ne.s32.totalorder %s89, %s90
    %p102 = scmp.eq.s32.totalorder %s17, 1
    %p103 = por %p101, %p102
    %p105 = scmp.ne.s32.totalorder %s90, %s104
    %p106 = scmp.eq.s32.totalorder %s17, 0
    %p107 = por %p105, %p106
    %s109 = sadd.s32 %s108, 1
    %p112 = scmp.eq.s32.totalorder %s11, 1
    %p113 = scmp.ne.s32.totalorder %s108, %s110
    %p114 = scmp.eq.s32.totalorder %s11, 0
    %p115 = por %p113, %p114
    %p116 = scmp.ne.s32.totalorder %s108, %s110
    %p117 = scmp.eq.s32.totalorder %s16, 1
    %p118 = por %p116, %p117
    %p119 = scmp.ne.s32.totalorder %s110, %s111
    %p120 = scmp.eq.s32.totalorder %s16, 0
    %p121 = por %p119, %p120
    %p122 = scmp.ne.s32.totalorder %s110, %s111
    %p123 = scmp.eq.s32.totalorder %s17, 1
    %p124 = por %p122, %p123
    %p126 = scmp.ne.s32.totalorder %s111, %s125
    %p127 = scmp.eq.s32.totalorder %s17, 0
    %p128 = por %p126, %p127
    %s129 = ssub.s32 %s11, %s18
    %p130 = scmp.eq.s32.totalorder %s129, 0
    %s132 = sadd.s32 %s131, 1
    %s133 = scalar_select %p130, %s131, %s132
    %p136 = pneg %p130
    %p137 = scmp.eq.s32.totalorder %s11, 1
    %p138 = por %p136, %p137
    %p139 = scmp.ne.s32.totalorder %s131, %s134
    %p140 = scmp.eq.s32.totalorder %s11, 0
    %p141 = por %p139, %p140
    %p142 = scmp.ne.s32.totalorder %s131, %s134
    %p143 = scmp.eq.s32.totalorder %s16, 1
    %p144 = por %p142, %p143
    %p145 = scmp.ne.s32.totalorder %s134, %s135
    %p146 = scmp.eq.s32.totalorder %s16, 0
    %p147 = por %p145, %p146
    %p148 = scmp.ne.s32.totalorder %s134, %s135
    %p149 = scmp.eq.s32.totalorder %s17, 1
    %p150 = por %p148, %p149
    %p152 = scmp.ne.s32.totalorder %s135, %s151
    %p153 = scmp.eq.s32.totalorder %s17, 0
    %p154 = por %p152, %p153
    %p155 = scmp.le.s32.totalorder 1, %s11
    %p156 = scmp.lt.s32.totalorder %s11, 3
    %p157 = pnand %p155, %p156
    %p158 = pneg %p157
    // Predicated region
    $region9: #{tpu_custom_call.1} parent=5 // pred_check
      _
    $region10: #{tpu_custom_call.1} parent=5 // pred_check_branch
      %160 = sbr.rel (%p157) target = $region12
    $region11: #{tpu_custom_call.1} parent=5 // pred_region
      %s161 = ssub.s32 %s11, 1
      // Predicated region
      $region13: #{tpu_custom_call.1} parent=11 // pred_check
        %p162 = pneg %p58
      $region14: #{tpu_custom_call.1} parent=11 // pred_check_branch
        %164 = sbr.rel (%p162) target = $region16
      $region15: #{tpu_custom_call.1} parent=11 // pred_region
        _
      $region16: #{tpu_custom_call.1} parent=11 // pred_fallthru
        _
      // Predicated region
      $region17: #{tpu_custom_call.1} parent=11 // pred_check
        %p165 = pneg %p79
      $region18: #{tpu_custom_call.1} parent=11 // pred_check_branch
        %167 = sbr.rel (%p165) target = $region20
      $region19: #{tpu_custom_call.1} parent=11 // pred_region
        _
      $region20: #{tpu_custom_call.1} parent=11 // pred_fallthru
        _
      // Predicated region
      $region21: #{tpu_custom_call.1} parent=11 // pred_check
        %p168 = pneg %p100
      $region22: #{tpu_custom_call.1} parent=11 // pred_check_branch
        %170 = sbr.rel (%p168) target = $region24
      $region23: #{tpu_custom_call.1} parent=11 // pred_region
        _
      $region24: #{tpu_custom_call.1} parent=11 // pred_fallthru
        _
      // Predicated region
      $region25: #{tpu_custom_call.1} parent=11 // pred_check
        %p171 = pneg %p121
      $region26: #{tpu_custom_call.1} parent=11 // pred_check_branch
        %173 = sbr.rel (%p171) target = $region28
      $region27: #{tpu_custom_call.1} parent=11 // pred_region
        _
      $region28: #{tpu_custom_call.1} parent=11 // pred_fallthru
        _
    $region12: #{tpu_custom_call.1} parent=5 // pred_fallthru
      _
    %p174 = scmp.lt.s32.totalorder %s11, 2
    // Predicated region
    $region29: #{tpu_custom_call.1} parent=5 // pred_check
      %p175 = pneg %p174
    $region30: #{tpu_custom_call.1} parent=5 // pred_check_branch
      %177 = sbr.rel (%p175) target = $region32
    $region31: #{tpu_custom_call.1} parent=5 // pred_region
      // Predicated region
      $region33: #{tpu_custom_call.1} parent=31 // pred_check
        %p178 = pneg %p31
      $region34: #{tpu_custom_call.1} parent=31 // pred_check_branch
        %180 = sbr.rel (%p178) target = $region36
      $region35: #{tpu_custom_call.1} parent=31 // pred_region
        %p181 = scmp.lt.s32.totalorder %s11, 1
        %s182 = scalar_select %p181, %s11, 1
        %s183 = smul.addr %s182, 32
        %s184 = smul.addr %s183, 8
        %s185 = scalar_lea.vmem %s0, %s184
      $region36: #{tpu_custom_call.1} parent=31 // pred_fallthru
        _
    $region32: #{tpu_custom_call.1} parent=5 // pred_fallthru
      _
    %p186 = scmp.le.s32.totalorder 1, %s11
    %p187 = scmp.lt.s32.totalorder %s11, 3
    %p188 = pnand %p186, %p187
    %p189 = pneg %p188
    // Predicated region
    $region37: #{tpu_custom_call.1} parent=5 // pred_check
      _
    $region38: #{tpu_custom_call.1} parent=5 // pred_check_branch
      %191 = sbr.rel (%p188) target = $region40
    $region39: #{tpu_custom_call.1} parent=5 // pred_region
      %s192 = ssub.s32 %s11, 1
      %p193 = scmp.lt.s32.totalorder %s16, 1
      %s194 = scalar_select %p193, %s16, 1
      %s195 = smul.addr %s194, 32
      %s196 = smul.addr %s195, 8
      %s197 = scalar_lea.vmem %s0, %s196
      %p198 = pneg %p37
      %p199 = pneg %p34
      %p200 = pneg %p58
      %p201 = pneg %p55
      %p202 = pneg %p79
      %p203 = pneg %p76
      %p204 = pneg %p100
      %p205 = pneg %p97
      %p206 = pneg %p121
      %p207 = pneg %p118
      %p208 = pneg %p147
      %p209 = pneg %p144
      %p210 = scmp.lt.s32.totalorder %s16, 1
      %s211 = scalar_select %p210, %s16, 1
      %s212 = smul.addr %s211, 32
      %s213 = smul.addr %s212, 8
      %s214 = scalar_lea.vmem %s5, %s213
      %p215 = scmp.lt.s32.totalorder %s16, 1
      %s216 = scalar_select %p215, %s16, 1
      %s217 = smul.addr %s216, 32
      %s218 = smul.addr %s217, 8
      %s219 = scalar_lea.vmem %s0, %s218
      %p220 = scmp.lt.s32.totalorder %s16, 1
      %s221 = scalar_select %p220, %s16, 1
      %s222 = smul.addr %s221, 32
      %s223 = smul.addr %s222, 8
      %s224 = scalar_lea.vmem %s5, %s223
      %vm225 = vcmask 31744
      %226 = vst.msk [vmem:[#allocation2] sm:$0xff] %vm225, 0.0
      %227 = vst.msk [vmem:[#allocation2 + $0x8] sm:$0xff] %vm225, 0.0
      %vm228 = vcmask 25600
      %229 = vst.msk [vmem:[#allocation2 + $0x10] sm:$0x3] %vm228, 0.0
      %230 = vst.msk [vmem:[#allocation2 + $0x18] sm:$0xff] %vm225, 0.0
      %231 = vst.msk [vmem:[#allocation2 + $0x20] sm:$0xff] %vm225, 0.0
      %232 = vst.msk [vmem:[#allocation2 + $0x28] sm:$0x3] %vm228, 0.0
      %233 = vst.msk [vmem:[#allocation2 + $0x30] sm:$0xff] %vm225, 0.0
      %234 = vst.msk [vmem:[#allocation2 + $0x38] sm:$0xff] %vm225, 0.0
      %235 = vst.msk [vmem:[#allocation2 + $0x40] sm:$0x3] %vm228, 0.0
      %236 = vst.msk [vmem:[#allocation2 + $0x48] sm:$0xff] %vm225, 0.0
      %237 = vst.msk [vmem:[#allocation2 + $0x50] sm:$0xff] %vm225, 0.0
      %238 = vst.msk [vmem:[#allocation2 + $0x58] sm:$0x3] %vm228, 0.0
      %239 = vst.msk [vmem:[#allocation2 + $0x60] sm:$0xff] %vm225, 0.0
      %240 = vst.msk [vmem:[#allocation2 + $0x68] sm:$0xff] %vm225, 0.0
      %241 = vst.msk [vmem:[#allocation2 + $0x70] sm:$0x3] %vm228, 0.0
      %242 = vst.msk [vmem:[#allocation2 + $0x78] sm:$0xff] %vm225, 0.0
      %243 = vst.msk [vmem:[#allocation2 + $0x80] sm:$0xff] %vm225, 0.0
      %244 = vst.msk [vmem:[#allocation2 + $0x88] sm:$0x3] %vm228, 0.0
      %245 = vst.msk [vmem:[#allocation2 + $0x90] sm:$0xff] %vm225, 0.0
      %246 = vst.msk [vmem:[#allocation2 + $0x98] sm:$0xff] %vm225, 0.0
      %247 = vst.msk [vmem:[#allocation2 + $0xa0] sm:$0x3] %vm228, 0.0
      %248 = vst.msk [vmem:[#allocation2 + $0xa8] sm:$0xff] %vm225, 0.0
      %249 = vst.msk [vmem:[#allocation2 + $0xb0] sm:$0xff] %vm225, 0.0
      %250 = vst.msk [vmem:[#allocation2 + $0xb8] sm:$0x3] %vm228, 0.0
      %251 = vst.msk [vmem:[#allocation2 + $0xc0] sm:$0xff] %vm225, 0.0
      %252 = vst.msk [vmem:[#allocation2 + $0xc8] sm:$0xff] %vm225, 0.0
      %253 = vst.msk [vmem:[#allocation2 + $0xd0] sm:$0x3] %vm228, 0.0
      %254 = vst.msk [vmem:[#allocation2 + $0xd8] sm:$0xff] %vm225, 0.0
      %255 = vst.msk [vmem:[#allocation2 + $0xe0] sm:$0xff] %vm225, 0.0
      %256 = vst.msk [vmem:[#allocation2 + $0xe8] sm:$0x3] %vm228, 0.0
      %257 = vst.msk [vmem:[#allocation2 + $0xf0] sm:$0xff] %vm225, 0.0
      %258 = vst.msk [vmem:[#allocation2 + $0xf8] sm:$0xff] %vm225, 0.0
      %259 = vst.msk [vmem:[#allocation2 + $0x100] sm:$0x3] %vm228, 0.0
      %260 = vst.msk [vmem:[#allocation2 + $0x108] sm:$0xff] %vm225, 0.0
      %261 = vst.msk [vmem:[#allocation2 + $0x110] sm:$0xff] %vm225, 0.0
      %262 = vst.msk [vmem:[#allocation2 + $0x118] sm:$0x3] %vm228, 0.0
      %263 = vst.msk [vmem:[#allocation2 + $0x120] sm:$0xff] %vm225, 0.0
      %264 = vst.msk [vmem:[#allocation2 + $0x128] sm:$0xff] %vm225, 0.0
      %265 = vst.msk [vmem:[#allocation2 + $0x130] sm:$0x3] %vm228, 0.0
      %266 = vst.msk [vmem:[#allocation2 + $0x138] sm:$0xff] %vm225, 0.0
      %267 = vst.msk [vmem:[#allocation2 + $0x140] sm:$0xff] %vm225, 0.0
      %268 = vst.msk [vmem:[#allocation2 + $0x148] sm:$0x3] %vm228, 0.0
      %269 = vst.msk [vmem:[#allocation2 + $0x150] sm:$0xff] %vm225, 0.0
      %270 = vst.msk [vmem:[#allocation2 + $0x158] sm:$0xff] %vm225, 0.0
      %271 = vst.msk [vmem:[#allocation2 + $0x160] sm:$0x3] %vm228, 0.0
      %272 = vst.msk [vmem:[#allocation2 + $0x168] sm:$0xff] %vm225, 0.0
      %273 = vst.msk [vmem:[#allocation2 + $0x170] sm:$0xff] %vm225, 0.0
      %274 = vst.msk [vmem:[#allocation2 + $0x178] sm:$0x3] %vm228, 0.0
      %275 = vst.msk [vmem:[#allocation2 + $0x180] sm:$0xff] %vm225, 0.0
      %276 = vst.msk [vmem:[#allocation2 + $0x188] sm:$0xff] %vm225, 0.0
      %277 = vst.msk [vmem:[#allocation2 + $0x190] sm:$0x3] %vm228, 0.0
      %278 = vst.msk [vmem:[#allocation2 + $0x198] sm:$0xff] %vm225, 0.0
      %279 = vst.msk [vmem:[#allocation2 + $0x1a0] sm:$0xff] %vm225, 0.0
      %280 = vst.msk [vmem:[#allocation2 + $0x1a8] sm:$0x3] %vm228, 0.0
      %v281 = vld [vmem:[%s219] sm:$0xff]
      %v282 = vld [vmem:[%s219 + $0x8] sm:$0xff]
      %v283 = vld [vmem:[%s219 + $0x10] sm:$0xff]
      %v284 = vld [vmem:[%s219 + $0x18] sm:$0xff]
      %v285 = vld [vmem:[%s219 + $0x20] sm:$0xff]
      %v286 = vld [vmem:[%s219 + $0x28] sm:$0xff]
      %v287 = vld [vmem:[%s219 + $0x30] sm:$0xff]
      %v288 = vld [vmem:[%s219 + $0x38] sm:$0xff]
      %v289 = vld [vmem:[%s219 + $0x40] sm:$0xff]
      %v290 = vld [vmem:[%s219 + $0x48] sm:$0xff]
      %v291 = vld [vmem:[%s219 + $0x50] sm:$0xff]
      %v292 = vld [vmem:[%s219 + $0x58] sm:$0xff]
      %v293 = vld [vmem:[%s219 + $0x60] sm:$0xff]
      %v294 = vld [vmem:[%s219 + $0x68] sm:$0xff]
      %v295 = vld [vmem:[%s219 + $0x70] sm:$0xff]
      %v296 = vld [vmem:[%s219 + $0x78] sm:$0xff]
      %v297 = vld [vmem:[%s219 + $0x80] sm:$0xff]
      %v298 = vld [vmem:[%s219 + $0x88] sm:$0xff]
      %v299 = vld [vmem:[%s219 + $0x90] sm:$0xff]
      %v300 = vld [vmem:[%s219 + $0x98] sm:$0xff]
      %v301 = vld [vmem:[%s219 + $0xa0] sm:$0xff]
      %v302 = vld [vmem:[%s219 + $0xa8] sm:$0xff]
      %v303 = vld [vmem:[%s219 + $0xb0] sm:$0xff]
      %v304 = vld [vmem:[%s219 + $0xb8] sm:$0xff]
      %v305 = vld [vmem:[%s219 + $0xc0] sm:$0xff]
      %v306 = vld [vmem:[%s219 + $0xc8] sm:$0xff]
      %v307 = vld [vmem:[%s219 + $0xd0] sm:$0xff]
      %v308 = vld [vmem:[%s219 + $0xd8] sm:$0xff]
      %v309 = vld [vmem:[%s219 + $0xe0] sm:$0xff]
      %v310 = vld [vmem:[%s219 + $0xe8] sm:$0xff]
      %v311 = vld [vmem:[%s219 + $0xf0] sm:$0xff]
      %v312 = vld [vmem:[%s219 + $0xf8] sm:$0xff]
      %s313 = scalar_lea.vmem [#allocation2], 24
      %314 = vst.msk [vmem:[%s313 + $0x1] sm:$0xff] %vm225, %v281
      %315 = vst.msk [vmem:[%s313 + $0x9] sm:$0xff] %vm225, %v282
      %316 = vst.msk [vmem:[%s313 + $0x19] sm:$0xff] %vm225, %v283
      %317 = vst.msk [vmem:[%s313 + $0x21] sm:$0xff] %vm225, %v284
      %318 = vst.msk [vmem:[%s313 + $0x31] sm:$0xff] %vm225, %v285
      %319 = vst.msk [vmem:[%s313 + $0x39] sm:$0xff] %vm225, %v286
      %320 = vst.msk [vmem:[%s313 + $0x49] sm:$0xff] %vm225, %v287
      %321 = vst.msk [vmem:[%s313 + $0x51] sm:$0xff] %vm225, %v288
      %322 = vst.msk [vmem:[%s313 + $0x61] sm:$0xff] %vm225, %v289
      %323 = vst.msk [vmem:[%s313 + $0x69] sm:$0xff] %vm225, %v290
      %324 = vst.msk [vmem:[%s313 + $0x79] sm:$0xff] %vm225, %v291
      %325 = vst.msk [vmem:[%s313 + $0x81] sm:$0xff] %vm225, %v292
      %326 = vst.msk [vmem:[%s313 + $0x91] sm:$0xff] %vm225, %v293
      %327 = vst.msk [vmem:[%s313 + $0x99] sm:$0xff] %vm225, %v294
      %328 = vst.msk [vmem:[%s313 + $0xa9] sm:$0xff] %vm225, %v295
      %329 = vst.msk [vmem:[%s313 + $0xb1] sm:$0xff] %vm225, %v296
      %330 = vst.msk [vmem:[%s313 + $0xc1] sm:$0xff] %vm225, %v297
      %331 = vst.msk [vmem:[%s313 + $0xc9] sm:$0xff] %vm225, %v298
      %332 = vst.msk [vmem:[%s313 + $0xd9] sm:$0xff] %vm225, %v299
      %333 = vst.msk [vmem:[%s313 + $0xe1] sm:$0xff] %vm225, %v300
      %334 = vst.msk [vmem:[%s313 + $0xf1] sm:$0xff] %vm225, %v301
      %335 = vst.msk [vmem:[%s313 + $0xf9] sm:$0xff] %vm225, %v302
      %336 = vst.msk [vmem:[%s313 + $0x109] sm:$0xff] %vm225, %v303
      %337 = vst.msk [vmem:[%s313 + $0x111] sm:$0xff] %vm225, %v304
      %338 = vst.msk [vmem:[%s313 + $0x121] sm:$0xff] %vm225, %v305
      %339 = vst.msk [vmem:[%s313 + $0x129] sm:$0xff] %vm225, %v306
      %340 = vst.msk [vmem:[%s313 + $0x139] sm:$0xff] %vm225, %v307
      %341 = vst.msk [vmem:[%s313 + $0x141] sm:$0xff] %vm225, %v308
      %342 = vst.msk [vmem:[%s313 + $0x151] sm:$0xff] %vm225, %v309
      %343 = vst.msk [vmem:[%s313 + $0x159] sm:$0xff] %vm225, %v310
      %344 = vst.msk [vmem:[%s313 + $0x169] sm:$0xff] %vm225, %v311
      %345 = vst.msk [vmem:[%s313 + $0x171] sm:$0xff] %vm225, %v312
      %v346 = vld [vmem:[#allocation2] sm:$0xff]
      %v347 = vld [vmem:[#allocation2 + $0x8] sm:$0xff]
      %v348 = vld [vmem:[#allocation2 + $0x10] sm:$0x3]
      %v349 = vld [vmem:[#allocation2 + $0x18] sm:$0xff]
      %v350 = vld [vmem:[#allocation2 + $0x20] sm:$0xff]
      %v351 = vld [vmem:[#allocation2 + $0x28] sm:$0x3]
      %v352 = vld [vmem:[#allocation2 + $0x30] sm:$0xff]
      %v353 = vld [vmem:[#allocation2 + $0x38] sm:$0xff]
      %v354 = vld [vmem:[#allocation2 + $0x40] sm:$0x3]
      %v355 = vld [vmem:[#allocation2 + $0x48] sm:$0xff]
      %v356 = vld [vmem:[#allocation2 + $0x50] sm:$0xff]
      %v357 = vld [vmem:[#allocation2 + $0x58] sm:$0x3]
      %v358 = vld [vmem:[#allocation2 + $0x60] sm:$0xff]
      %v359 = vld [vmem:[#allocation2 + $0x68] sm:$0xff]
      %v360 = vld [vmem:[#allocation2 + $0x70] sm:$0x3]
      %v361 = vld [vmem:[#allocation2 + $0x78] sm:$0xff]
      %v362 = vld [vmem:[#allocation2 + $0x80] sm:$0xff]
      %v363 = vld [vmem:[#allocation2 + $0x88] sm:$0x3]
      %v364 = vld [vmem:[#allocation2 + $0x90] sm:$0xff]
      %v365 = vld [vmem:[#allocation2 + $0x98] sm:$0xff]
      %v366 = vld [vmem:[#allocation2 + $0xa0] sm:$0x3]
      %v367 = vld [vmem:[#allocation2 + $0xa8] sm:$0xff]
      %v368 = vld [vmem:[#allocation2 + $0xb0] sm:$0xff]
      %v369 = vld [vmem:[#allocation2 + $0xb8] sm:$0x3]
      %v370 = vld [vmem:[#allocation2 + $0xc0] sm:$0xff]
      %v371 = vld [vmem:[#allocation2 + $0xc8] sm:$0xff]
      %v372 = vld [vmem:[#allocation2 + $0xd0] sm:$0x3]
      %v373 = vld [vmem:[#allocation2 + $0xd8] sm:$0xff]
      %v374 = vld [vmem:[#allocation2 + $0xe0] sm:$0xff]
      %v375 = vld [vmem:[#allocation2 + $0xe8] sm:$0x3]
      %v376 = vld [vmem:[#allocation2 + $0xf0] sm:$0xff]
      %v377 = vld [vmem:[#allocation2 + $0xf8] sm:$0xff]
      %v378 = vld [vmem:[#allocation2 + $0x100] sm:$0x3]
      %v379 = vld [vmem:[#allocation2 + $0x108] sm:$0xff]
      %v380 = vld [vmem:[#allocation2 + $0x110] sm:$0xff]
      %v381 = vld [vmem:[#allocation2 + $0x118] sm:$0x3]
      %v382 = vld [vmem:[#allocation2 + $0x120] sm:$0xff]
      %v383 = vld [vmem:[#allocation2 + $0x128] sm:$0xff]
      %v384 = vld [vmem:[#allocation2 + $0x130] sm:$0x3]
      %v385 = vld [vmem:[#allocation2 + $0x138] sm:$0xff]
      %v386 = vld [vmem:[#allocation2 + $0x140] sm:$0xff]
      %v387 = vld [vmem:[#allocation2 + $0x148] sm:$0x3]
      %v388 = vld [vmem:[#allocation2 + $0x150] sm:$0xff]
      %v389 = vld [vmem:[#allocation2 + $0x158] sm:$0xff]
      %v390 = vld [vmem:[#allocation2 + $0x160] sm:$0x3]
      %v391 = vld [vmem:[#allocation2 + $0x168] sm:$0xff]
      %v392 = vld [vmem:[#allocation2 + $0x170] sm:$0xff]
      %v393 = vld [vmem:[#allocation2 + $0x178] sm:$0x3]
      %v394 = vld [vmem:[#allocation2 + $0x180] sm:$0xff]
      %v395 = vld [vmem:[#allocation2 + $0x188] sm:$0xff]
      %v396 = vld [vmem:[#allocation2 + $0x190] sm:$0x3]
      %v397 = vld [vmem:[#allocation2 + $0x198] sm:$0xff]
      %v398 = vld [vmem:[#allocation2 + $0x1a0] sm:$0xff]
      %v399 = vld [vmem:[#allocation2 + $0x1a8] sm:$0x3]
      %400 = vst.msk [vmem:[#allocation3] sm:$0xff] %vm225, %v346
      %401 = vst.msk [vmem:[#allocation3 + $0x8] sm:$0xff] %vm225, %v347
      %402 = vst.msk [vmem:[#allocation3 + $0x10] sm:$0xff] %vm225, %v349
      %403 = vst.msk [vmem:[#allocation3 + $0x18] sm:$0xff] %vm225, %v350
      %404 = vst.msk [vmem:[#allocation3 + $0x20] sm:$0xff] %vm225, %v352
      %405 = vst.msk [vmem:[#allocation3 + $0x28] sm:$0xff] %vm225, %v353
      %406 = vst.msk [vmem:[#allocation3 + $0x30] sm:$0xff] %vm225, %v355
      %407 = vst.msk [vmem:[#allocation3 + $0x38] sm:$0xff] %vm225, %v356
      %408 = vst.msk [vmem:[#allocation3 + $0x40] sm:$0xff] %vm225, %v358
      %409 = vst.msk [vmem:[#allocation3 + $0x48] sm:$0xff] %vm225, %v359
      %410 = vst.msk [vmem:[#allocation3 + $0x50] sm:$0xff] %vm225, %v361
      %411 = vst.msk [vmem:[#allocation3 + $0x58] sm:$0xff] %vm225, %v362
      %412 = vst.msk [vmem:[#allocation3 + $0x60] sm:$0xff] %vm225, %v364
      %413 = vst.msk [vmem:[#allocation3 + $0x68] sm:$0xff] %vm225, %v365
      %414 = vst.msk [vmem:[#allocation3 + $0x70] sm:$0xff] %vm225, %v367
      %415 = vst.msk [vmem:[#allocation3 + $0x78] sm:$0xff] %vm225, %v368
      %416 = vst.msk [vmem:[#allocation3 + $0x80] sm:$0xff] %vm225, %v370
      %417 = vst.msk [vmem:[#allocation3 + $0x88] sm:$0xff] %vm225, %v371
      %418 = vst.msk [vmem:[#allocation3 + $0x90] sm:$0xff] %vm225, %v373
      %419 = vst.msk [vmem:[#allocation3 + $0x98] sm:$0xff] %vm225, %v374
      %420 = vst.msk [vmem:[#allocation3 + $0xa0] sm:$0xff] %vm225, %v376
      %421 = vst.msk [vmem:[#allocation3 + $0xa8] sm:$0xff] %vm225, %v377
      %422 = vst.msk [vmem:[#allocation3 + $0xb0] sm:$0xff] %vm225, %v379
      %423 = vst.msk [vmem:[#allocation3 + $0xb8] sm:$0xff] %vm225, %v380
      %424 = vst.msk [vmem:[#allocation3 + $0xc0] sm:$0xff] %vm225, %v382
      %425 = vst.msk [vmem:[#allocation3 + $0xc8] sm:$0xff] %vm225, %v383
      %426 = vst.msk [vmem:[#allocation3 + $0xd0] sm:$0xff] %vm225, %v385
      %427 = vst.msk [vmem:[#allocation3 + $0xd8] sm:$0xff] %vm225, %v386
      %428 = vst.msk [vmem:[#allocation3 + $0xe0] sm:$0xff] %vm225, %v388
      %429 = vst.msk [vmem:[#allocation3 + $0xe8] sm:$0xff] %vm225, %v389
      %430 = vst.msk [vmem:[#allocation3 + $0xf0] sm:$0xff] %vm225, %v391
      %431 = vst.msk [vmem:[#allocation3 + $0xf8] sm:$0xff] %vm225, %v392
      %vm480 = vcmask 1046528
      %v481 = vrot.slane %v346, 1
      %v482 = vrot.slane %v347, 1
      %v483 = vsel %vm480, %v481, %v482
      %v484 = vrot.slane %v348, 1
      %v485 = vsel %vm480, %v482, %v484
      %v486 = vrot.slane %v349, 1
      %v487 = vrot.slane %v350, 1
      %v488 = vsel %vm480, %v486, %v487
      %v489 = vrot.slane %v351, 1
      %v490 = vsel %vm480, %v487, %v489
      %v491 = vrot.slane %v352, 1
      %v492 = vrot.slane %v353, 1
      %v493 = vsel %vm480, %v491, %v492
      %v494 = vrot.slane %v354, 1
      %v495 = vsel %vm480, %v492, %v494
      %v496 = vrot.slane %v355, 1
      %v497 = vrot.slane %v356, 1
      %v498 = vsel %vm480, %v496, %v497
      %v499 = vrot.slane %v357, 1
      %v500 = vsel %vm480, %v497, %v499
      %v501 = vrot.slane %v358, 1
      %v502 = vrot.slane %v359, 1
      %v503 = vsel %vm480, %v501, %v502
      %v504 = vrot.slane %v360, 1
      %v505 = vsel %vm480, %v502, %v504
      %v506 = vrot.slane %v361, 1
      %v507 = vrot.slane %v362, 1
      %v508 = vsel %vm480, %v506, %v507
      %v509 = vrot.slane %v363, 1
      %v510 = vsel %vm480, %v507, %v509
      %v511 = vrot.slane %v364, 1
      %v512 = vrot.slane %v365, 1
      %v513 = vsel %vm480, %v511, %v512
      %v514 = vrot.slane %v366, 1
      %v515 = vsel %vm480, %v512, %v514
      %v516 = vrot.slane %v367, 1
      %v517 = vrot.slane %v368, 1
      %v518 = vsel %vm480, %v516, %v517
      %v519 = vrot.slane %v369, 1
      %v520 = vsel %vm480, %v517, %v519
      %v521 = vrot.slane %v370, 1
      %v522 = vrot.slane %v371, 1
      %v523 = vsel %vm480, %v521, %v522
      %v524 = vrot.slane %v372, 1
      %v525 = vsel %vm480, %v522, %v524
      %v526 = vrot.slane %v373, 1
      %v527 = vrot.slane %v374, 1
      %v528 = vsel %vm480, %v526, %v527
      %v529 = vrot.slane %v375, 1
      %v530 = vsel %vm480, %v527, %v529
      %v531 = vrot.slane %v376, 1
      %v532 = vrot.slane %v377, 1
      %v533 = vsel %vm480, %v531, %v532
      %v534 = vrot.slane %v378, 1
      %v535 = vsel %vm480, %v532, %v534
      %v536 = vrot.slane %v379, 1
      %v537 = vrot.slane %v380, 1
      %v538 = vsel %vm480, %v536, %v537
      %v539 = vrot.slane %v381, 1
      %v540 = vsel %vm480, %v537, %v539
      %v541 = vrot.slane %v382, 1
      %v542 = vrot.slane %v383, 1
      %v543 = vsel %vm480, %v541, %v542
      %v544 = vrot.slane %v384, 1
      %v545 = vsel %vm480, %v542, %v544
      %v546 = vrot.slane %v385, 1
      %v547 = vrot.slane %v386, 1
      %v548 = vsel %vm480, %v546, %v547
      %v549 = vrot.slane %v387, 1
      %v550 = vsel %vm480, %v547, %v549
      %v551 = vrot.slane %v388, 1
      %v552 = vrot.slane %v389, 1
      %v553 = vsel %vm480, %v551, %v552
      %v554 = vrot.slane %v390, 1
      %v555 = vsel %vm480, %v552, %v554
      %v556 = vrot.slane %v391, 1
      %v557 = vrot.slane %v392, 1
      %v558 = vsel %vm480, %v556, %v557
      %v559 = vrot.slane %v393, 1
      %v560 = vsel %vm480, %v557, %v559
      %561 = vrot.lane.b32.xlu0 %v483, 4
      %v562 = vpop.permute.xlu0 %561
      %563 = vrot.lane.b32.xlu0 %v485, 4
      %v564 = vpop.permute.xlu0 %563
      %565 = vrot.lane.b32.xlu0 %v488, 4
      %v566 = vpop.permute.xlu0 %565
      %567 = vrot.lane.b32.xlu0 %v490, 4
      %v568 = vpop.permute.xlu0 %567
      %569 = vrot.lane.b32.xlu0 %v493, 4
      %v570 = vpop.permute.xlu0 %569
      %571 = vrot.lane.b32.xlu0 %v495, 4
      %v572 = vpop.permute.xlu0 %571
      %573 = vrot.lane.b32.xlu0 %v498, 4
      %v574 = vpop.permute.xlu0 %573
      %575 = vrot.lane.b32.xlu0 %v500, 4
      %v576 = vpop.permute.xlu0 %575
      %577 = vrot.lane.b32.xlu0 %v503, 4
      %v578 = vpop.permute.xlu0 %577
      %579 = vrot.lane.b32.xlu0 %v505, 4
      %v580 = vpop.permute.xlu0 %579
      %581 = vrot.lane.b32.xlu0 %v508, 4
      %v582 = vpop.permute.xlu0 %581
      %583 = vrot.lane.b32.xlu0 %v510, 4
      %v584 = vpop.permute.xlu0 %583
      %585 = vrot.lane.b32.xlu0 %v513, 4
      %v586 = vpop.permute.xlu0 %585
      %587 = vrot.lane.b32.xlu0 %v515, 4
      %v588 = vpop.permute.xlu0 %587
      %589 = vrot.lane.b32.xlu0 %v518, 4
      %v590 = vpop.permute.xlu0 %589
      %591 = vrot.lane.b32.xlu0 %v520, 4
      %v592 = vpop.permute.xlu0 %591
      %593 = vrot.lane.b32.xlu0 %v523, 4
      %v594 = vpop.permute.xlu0 %593
      %595 = vrot.lane.b32.xlu0 %v525, 4
      %v596 = vpop.permute.xlu0 %595
      %597 = vrot.lane.b32.xlu0 %v528, 4
      %v598 = vpop.permute.xlu0 %597
      %599 = vrot.lane.b32.xlu0 %v530, 4
      %v600 = vpop.permute.xlu0 %599
      %601 = vrot.lane.b32.xlu0 %v533, 4
      %v602 = vpop.permute.xlu0 %601
      %603 = vrot.lane.b32.xlu0 %v535, 4
      %v604 = vpop.permute.xlu0 %603
      %605 = vrot.lane.b32.xlu0 %v538, 4
      %v606 = vpop.permute.xlu0 %605
      %607 = vrot.lane.b32.xlu0 %v540, 4
      %v608 = vpop.permute.xlu0 %607
      %609 = vrot.lane.b32.xlu0 %v543, 4
      %v610 = vpop.permute.xlu0 %609
      %611 = vrot.lane.b32.xlu0 %v545, 4
      %v612 = vpop.permute.xlu0 %611
      %613 = vrot.lane.b32.xlu0 %v548, 4
      %v614 = vpop.permute.xlu0 %613
      %615 = vrot.lane.b32.xlu0 %v550, 4
      %v616 = vpop.permute.xlu0 %615
      %617 = vrot.lane.b32.xlu0 %v553, 4
      %v618 = vpop.permute.xlu0 %617
      %619 = vrot.lane.b32.xlu0 %v555, 4
      %v620 = vpop.permute.xlu0 %619
      %621 = vrot.lane.b32.xlu0 %v558, 4
      %v622 = vpop.permute.xlu0 %621
      %623 = vrot.lane.b32.xlu0 %v560, 4
      %v624 = vpop.permute.xlu0 %623
      %vm657 = vcmask 64544
      %658 = vst.msk [vmem:[#allocation3] sm:$0xff] %vm657, %v562
      %659 = vst.msk [vmem:[#allocation3 + $0x8] sm:$0xff] %vm657, %v564
      %660 = vst.msk [vmem:[#allocation3 + $0x10] sm:$0xff] %vm657, %v566
      %661 = vst.msk [vmem:[#allocation3 + $0x18] sm:$0xff] %vm657, %v568
      %662 = vst.msk [vmem:[#allocation3 + $0x20] sm:$0xff] %vm657, %v570
      %663 = vst.msk [vmem:[#allocation3 + $0x28] sm:$0xff] %vm657, %v572
      %664 = vst.msk [vmem:[#allocation3 + $0x30] sm:$0xff] %vm657, %v574
      %665 = vst.msk [vmem:[#allocation3 + $0x38] sm:$0xff] %vm657, %v576
      %666 = vst.msk [vmem:[#allocation3 + $0x40] sm:$0xff] %vm657, %v578
      %667 = vst.msk [vmem:[#allocation3 + $0x48] sm:$0xff] %vm657, %v580
      %668 = vst.msk [vmem:[#allocation3 + $0x50] sm:$0xff] %vm657, %v582
      %669 = vst.msk [vmem:[#allocation3 + $0x58] sm:$0xff] %vm657, %v584
      %670 = vst.msk [vmem:[#allocation3 + $0x60] sm:$0xff] %vm657, %v586
      %671 = vst.msk [vmem:[#allocation3 + $0x68] sm:$0xff] %vm657, %v588
      %672 = vst.msk [vmem:[#allocation3 + $0x70] sm:$0xff] %vm657, %v590
      %673 = vst.msk [vmem:[#allocation3 + $0x78] sm:$0xff] %vm657, %v592
      %674 = vst.msk [vmem:[#allocation3 + $0x80] sm:$0xff] %vm657, %v594
      %675 = vst.msk [vmem:[#allocation3 + $0x88] sm:$0xff] %vm657, %v596
      %676 = vst.msk [vmem:[#allocation3 + $0x90] sm:$0xff] %vm657, %v598
      %677 = vst.msk [vmem:[#allocation3 + $0x98] sm:$0xff] %vm657, %v600
      %678 = vst.msk [vmem:[#allocation3 + $0xa0] sm:$0xff] %vm657, %v602
      %679 = vst.msk [vmem:[#allocation3 + $0xa8] sm:$0xff] %vm657, %v604
      %680 = vst.msk [vmem:[#allocation3 + $0xb0] sm:$0xff] %vm657, %v606
      %681 = vst.msk [vmem:[#allocation3 + $0xb8] sm:$0xff] %vm657, %v608
      %682 = vst.msk [vmem:[#allocation3 + $0xc0] sm:$0xff] %vm657, %v610
      %683 = vst.msk [vmem:[#allocation3 + $0xc8] sm:$0xff] %vm657, %v612
      %684 = vst.msk [vmem:[#allocation3 + $0xd0] sm:$0xff] %vm657, %v614
      %685 = vst.msk [vmem:[#allocation3 + $0xd8] sm:$0xff] %vm657, %v616
      %686 = vst.msk [vmem:[#allocation3 + $0xe0] sm:$0xff] %vm657, %v618
      %687 = vst.msk [vmem:[#allocation3 + $0xe8] sm:$0xff] %vm657, %v620
      %688 = vst.msk [vmem:[#allocation3 + $0xf0] sm:$0xff] %vm657, %v622
      %689 = vst.msk [vmem:[#allocation3 + $0xf8] sm:$0xff] %vm657, %v624
      %vm690 = vcmask 1045504
      %v691 = vrot.slane %v346, 2
      %v692 = vrot.slane %v347, 2
      %v693 = vsel %vm690, %v691, %v692
      %v694 = vrot.slane %v348, 2
      %v695 = vsel %vm690, %v692, %v694
      %v696 = vrot.slane %v349, 2
      %v697 = vrot.slane %v350, 2
      %v698 = vsel %vm690, %v696, %v697
      %v699 = vrot.slane %v351, 2
      %v700 = vsel %vm690, %v697, %v699
      %v701 = vrot.slane %v352, 2
      %v702 = vrot.slane %v353, 2
      %v703 = vsel %vm690, %v701, %v702
      %v704 = vrot.slane %v354, 2
      %v705 = vsel %vm690, %v702, %v704
      %v706 = vrot.slane %v355, 2
      %v707 = vrot.slane %v356, 2
      %v708 = vsel %vm690, %v706, %v707
      %v709 = vrot.slane %v357, 2
      %v710 = vsel %vm690, %v707, %v709
      %v711 = vrot.slane %v358, 2
      %v712 = vrot.slane %v359, 2
      %v713 = vsel %vm690, %v711, %v712
      %v714 = vrot.slane %v360, 2
      %v715 = vsel %vm690, %v712, %v714
      %v716 = vrot.slane %v361, 2
      %v717 = vrot.slane %v362, 2
      %v718 = vsel %vm690, %v716, %v717
      %v719 = vrot.slane %v363, 2
      %v720 = vsel %vm690, %v717, %v719
      %v721 = vrot.slane %v364, 2
      %v722 = vrot.slane %v365, 2
      %v723 = vsel %vm690, %v721, %v722
      %v724 = vrot.slane %v366, 2
      %v725 = vsel %vm690, %v722, %v724
      %v726 = vrot.slane %v367, 2
      %v727 = vrot.slane %v368, 2
      %v728 = vsel %vm690, %v726, %v727
      %v729 = vrot.slane %v369, 2
      %v730 = vsel %vm690, %v727, %v729
      %v731 = vrot.slane %v370, 2
      %v732 = vrot.slane %v371, 2
      %v733 = vsel %vm690, %v731, %v732
      %v734 = vrot.slane %v372, 2
      %v735 = vsel %vm690, %v732, %v734
      %v736 = vrot.slane %v373, 2
      %v737 = vrot.slane %v374, 2
      %v738 = vsel %vm690, %v736, %v737
      %v739 = vrot.slane %v375, 2
      %v740 = vsel %vm690, %v737, %v739
      %v741 = vrot.slane %v376, 2
      %v742 = vrot.slane %v377, 2
      %v743 = vsel %vm690, %v741, %v742
      %v744 = vrot.slane %v378, 2
      %v745 = vsel %vm690, %v742, %v744
      %v746 = vrot.slane %v379, 2
      %v747 = vrot.slane %v380, 2
      %v748 = vsel %vm690, %v746, %v747
      %v749 = vrot.slane %v381, 2
      %v750 = vsel %vm690, %v747, %v749
      %v751 = vrot.slane %v382, 2
      %v752 = vrot.slane %v383, 2
      %v753 = vsel %vm690, %v751, %v752
      %v754 = vrot.slane %v384, 2
      %v755 = vsel %vm690, %v752, %v754
      %v756 = vrot.slane %v385, 2
      %v757 = vrot.slane %v386, 2
      %v758 = vsel %vm690, %v756, %v757
      %v759 = vrot.slane %v387, 2
      %v760 = vsel %vm690, %v757, %v759
      %v761 = vrot.slane %v388, 2
      %v762 = vrot.slane %v389, 2
      %v763 = vsel %vm690, %v761, %v762
      %v764 = vrot.slane %v390, 2
      %v765 = vsel %vm690, %v762, %v764
      %v766 = vrot.slane %v391, 2
      %v767 = vrot.slane %v392, 2
      %v768 = vsel %vm690, %v766, %v767
      %v769 = vrot.slane %v393, 2
      %v770 = vsel %vm690, %v767, %v769
      %771 = vrot.lane.b32.xlu0 %v693, 8
      %v772 = vpop.permute.xlu0 %771
      %773 = vrot.lane.b32.xlu0 %v695, 8
      %v774 = vpop.permute.xlu0 %773
      %775 = vrot.lane.b32.xlu0 %v698, 8
      %v776 = vpop.permute.xlu0 %775
      %777 = vrot.lane.b32.xlu0 %v700, 8
      %v778 = vpop.permute.xlu0 %777
      %779 = vrot.lane.b32.xlu0 %v703, 8
      %v780 = vpop.permute.xlu0 %779
      %781 = vrot.lane.b32.xlu0 %v705, 8
      %v782 = vpop.permute.xlu0 %781
      %783 = vrot.lane.b32.xlu0 %v708, 8
      %v784 = vpop.permute.xlu0 %783
      %785 = vrot.lane.b32.xlu0 %v710, 8
      %v786 = vpop.permute.xlu0 %785
      %787 = vrot.lane.b32.xlu0 %v713, 8
      %v788 = vpop.permute.xlu0 %787
      %789 = vrot.lane.b32.xlu0 %v715, 8
      %v790 = vpop.permute.xlu0 %789
      %791 = vrot.lane.b32.xlu0 %v718, 8
      %v792 = vpop.permute.xlu0 %791
      %793 = vrot.lane.b32.xlu0 %v720, 8
      %v794 = vpop.permute.xlu0 %793
      %795 = vrot.lane.b32.xlu0 %v723, 8
      %v796 = vpop.permute.xlu0 %795
      %797 = vrot.lane.b32.xlu0 %v725, 8
      %v798 = vpop.permute.xlu0 %797
      %799 = vrot.lane.b32.xlu0 %v728, 8
      %v800 = vpop.permute.xlu0 %799
      %801 = vrot.lane.b32.xlu0 %v730, 8
      %v802 = vpop.permute.xlu0 %801
      %803 = vrot.lane.b32.xlu0 %v733, 8
      %v804 = vpop.permute.xlu0 %803
      %805 = vrot.lane.b32.xlu0 %v735, 8
      %v806 = vpop.permute.xlu0 %805
      %807 = vrot.lane.b32.xlu0 %v738, 8
      %v808 = vpop.permute.xlu0 %807
      %809 = vrot.lane.b32.xlu0 %v740, 8
      %v810 = vpop.permute.xlu0 %809
      %811 = vrot.lane.b32.xlu0 %v743, 8
      %v812 = vpop.permute.xlu0 %811
      %813 = vrot.lane.b32.xlu0 %v745, 8
      %v814 = vpop.permute.xlu0 %813
      %815 = vrot.lane.b32.xlu0 %v748, 8
      %v816 = vpop.permute.xlu0 %815
      %817 = vrot.lane.b32.xlu0 %v750, 8
      %v818 = vpop.permute.xlu0 %817
      %819 = vrot.lane.b32.xlu0 %v753, 8
      %v820 = vpop.permute.xlu0 %819
      %821 = vrot.lane.b32.xlu0 %v755, 8
      %v822 = vpop.permute.xlu0 %821
      %823 = vrot.lane.b32.xlu0 %v758, 8
      %v824 = vpop.permute.xlu0 %823
      %825 = vrot.lane.b32.xlu0 %v760, 8
      %v826 = vpop.permute.xlu0 %825
      %827 = vrot.lane.b32.xlu0 %v763, 8
      %v828 = vpop.permute.xlu0 %827
      %829 = vrot.lane.b32.xlu0 %v765, 8
      %v830 = vpop.permute.xlu0 %829
      %831 = vrot.lane.b32.xlu0 %v768, 8
      %v832 = vpop.permute.xlu0 %831
      %833 = vrot.lane.b32.xlu0 %v770, 8
      %v834 = vpop.permute.xlu0 %833
      %vm867 = vcmask 97344
      %868 = vst.msk [vmem:[#allocation3] sm:$0xff] %vm867, %v772
      %869 = vst.msk [vmem:[#allocation3 + $0x8] sm:$0xff] %vm867, %v774
      %870 = vst.msk [vmem:[#allocation3 + $0x10] sm:$0xff] %vm867, %v776
      %871 = vst.msk [vmem:[#allocation3 + $0x18] sm:$0xff] %vm867, %v778
      %872 = vst.msk [vmem:[#allocation3 + $0x20] sm:$0xff] %vm867, %v780
      %873 = vst.msk [vmem:[#allocation3 + $0x28] sm:$0xff] %vm867, %v782
      %874 = vst.msk [vmem:[#allocation3 + $0x30] sm:$0xff] %vm867, %v784
      %875 = vst.msk [vmem:[#allocation3 + $0x38] sm:$0xff] %vm867, %v786
      %876 = vst.msk [vmem:[#allocation3 + $0x40] sm:$0xff] %vm867, %v788
      %877 = vst.msk [vmem:[#allocation3 + $0x48] sm:$0xff] %vm867, %v790
      %878 = vst.msk [vmem:[#allocation3 + $0x50] sm:$0xff] %vm867, %v792
      %879 = vst.msk [vmem:[#allocation3 + $0x58] sm:$0xff] %vm867, %v794
      %880 = vst.msk [vmem:[#allocation3 + $0x60] sm:$0xff] %vm867, %v796
      %881 = vst.msk [vmem:[#allocation3 + $0x68] sm:$0xff] %vm867, %v798
      %882 = vst.msk [vmem:[#allocation3 + $0x70] sm:$0xff] %vm867, %v800
      %883 = vst.msk [vmem:[#allocation3 + $0x78] sm:$0xff] %vm867, %v802
      %884 = vst.msk [vmem:[#allocation3 + $0x80] sm:$0xff] %vm867, %v804
      %885 = vst.msk [vmem:[#allocation3 + $0x88] sm:$0xff] %vm867, %v806
      %886 = vst.msk [vmem:[#allocation3 + $0x90] sm:$0xff] %vm867, %v808
      %887 = vst.msk [vmem:[#allocation3 + $0x98] sm:$0xff] %vm867, %v810
      %888 = vst.msk [vmem:[#allocation3 + $0xa0] sm:$0xff] %vm867, %v812
      %889 = vst.msk [vmem:[#allocation3 + $0xa8] sm:$0xff] %vm867, %v814
      %890 = vst.msk [vmem:[#allocation3 + $0xb0] sm:$0xff] %vm867, %v816
      %891 = vst.msk [vmem:[#allocation3 + $0xb8] sm:$0xff] %vm867, %v818
      %892 = vst.msk [vmem:[#allocation3 + $0xc0] sm:$0xff] %vm867, %v820
      %893 = vst.msk [vmem:[#allocation3 + $0xc8] sm:$0xff] %vm867, %v822
      %894 = vst.msk [vmem:[#allocation3 + $0xd0] sm:$0xff] %vm867, %v824
      %895 = vst.msk [vmem:[#allocation3 + $0xd8] sm:$0xff] %vm867, %v826
      %896 = vst.msk [vmem:[#allocation3 + $0xe0] sm:$0xff] %vm867, %v828
      %897 = vst.msk [vmem:[#allocation3 + $0xe8] sm:$0xff] %vm867, %v830
      %898 = vst.msk [vmem:[#allocation3 + $0xf0] sm:$0xff] %vm867, %v832
      %899 = vst.msk [vmem:[#allocation3 + $0xf8] sm:$0xff] %vm867, %v834
      %902 = vrot.lane.b32.xlu0 %v349, 12
      %v903 = vpop.permute.xlu0 %902
      %904 = vrot.lane.b32.xlu0 %v350, 12
      %v905 = vpop.permute.xlu0 %904
      %906 = vrot.lane.b32.xlu0 %v352, 12
      %v907 = vpop.permute.xlu0 %906
      %908 = vrot.lane.b32.xlu0 %v353, 12
      %v909 = vpop.permute.xlu0 %908
      %910 = vrot.lane.b32.xlu0 %v355, 12
      %v911 = vpop.permute.xlu0 %910
      %912 = vrot.lane.b32.xlu0 %v356, 12
      %v913 = vpop.permute.xlu0 %912
      %914 = vrot.lane.b32.xlu0 %v358, 12
      %v915 = vpop.permute.xlu0 %914
      %916 = vrot.lane.b32.xlu0 %v359, 12
      %v917 = vpop.permute.xlu0 %916
      %918 = vrot.lane.b32.xlu0 %v361, 12
      %v919 = vpop.permute.xlu0 %918
      %920 = vrot.lane.b32.xlu0 %v362, 12
      %v921 = vpop.permute.xlu0 %920
      %922 = vrot.lane.b32.xlu0 %v364, 12
      %v923 = vpop.permute.xlu0 %922
      %924 = vrot.lane.b32.xlu0 %v365, 12
      %v925 = vpop.permute.xlu0 %924
      %926 = vrot.lane.b32.xlu0 %v367, 12
      %v927 = vpop.permute.xlu0 %926
      %928 = vrot.lane.b32.xlu0 %v368, 12
      %v929 = vpop.permute.xlu0 %928
      %930 = vrot.lane.b32.xlu0 %v370, 12
      %v931 = vpop.permute.xlu0 %930
      %932 = vrot.lane.b32.xlu0 %v371, 12
      %v933 = vpop.permute.xlu0 %932
      %934 = vrot.lane.b32.xlu0 %v373, 12
      %v935 = vpop.permute.xlu0 %934
      %936 = vrot.lane.b32.xlu0 %v374, 12
      %v937 = vpop.permute.xlu0 %936
      %938 = vrot.lane.b32.xlu0 %v376, 12
      %v939 = vpop.permute.xlu0 %938
      %940 = vrot.lane.b32.xlu0 %v377, 12
      %v941 = vpop.permute.xlu0 %940
      %942 = vrot.lane.b32.xlu0 %v379, 12
      %v943 = vpop.permute.xlu0 %942
      %944 = vrot.lane.b32.xlu0 %v380, 12
      %v945 = vpop.permute.xlu0 %944
      %946 = vrot.lane.b32.xlu0 %v382, 12
      %v947 = vpop.permute.xlu0 %946
      %948 = vrot.lane.b32.xlu0 %v383, 12
      %v949 = vpop.permute.xlu0 %948
      %950 = vrot.lane.b32.xlu0 %v385, 12
      %v951 = vpop.permute.xlu0 %950
      %952 = vrot.lane.b32.xlu0 %v386, 12
      %v953 = vpop.permute.xlu0 %952
      %954 = vrot.lane.b32.xlu0 %v388, 12
      %v955 = vpop.permute.xlu0 %954
      %956 = vrot.lane.b32.xlu0 %v389, 12
      %v957 = vpop.permute.xlu0 %956
      %958 = vrot.lane.b32.xlu0 %v391, 12
      %v959 = vpop.permute.xlu0 %958
      %960 = vrot.lane.b32.xlu0 %v392, 12
      %v961 = vpop.permute.xlu0 %960
      %962 = vrot.lane.b32.xlu0 %v394, 12
      %v963 = vpop.permute.xlu0 %962
      %964 = vrot.lane.b32.xlu0 %v395, 12
      %v965 = vpop.permute.xlu0 %964
      %vm998 = vcmask 130144
      %999 = vst.msk [vmem:[#allocation3] sm:$0xff] %vm998, %v903
      %1000 = vst.msk [vmem:[#allocation3 + $0x8] sm:$0xff] %vm998, %v905
      %1001 = vst.msk [vmem:[#allocation3 + $0x10] sm:$0xff] %vm998, %v907
      %1002 = vst.msk [vmem:[#allocation3 + $0x18] sm:$0xff] %vm998, %v909
      %1003 = vst.msk [vmem:[#allocation3 + $0x20] sm:$0xff] %vm998, %v911
      %1004 = vst.msk [vmem:[#allocation3 + $0x28] sm:$0xff] %vm998, %v913
      %1005 = vst.msk [vmem:[#allocation3 + $0x30] sm:$0xff] %vm998, %v915
      %1006 = vst.msk [vmem:[#allocation3 + $0x38] sm:$0xff] %vm998, %v917
      %1007 = vst.msk [vmem:[#allocation3 + $0x40] sm:$0xff] %vm998, %v919
      %1008 = vst.msk [vmem:[#allocation3 + $0x48] sm:$0xff] %vm998, %v921
      %1009 = vst.msk [vmem:[#allocation3 + $0x50] sm:$0xff] %vm998, %v923
      %1010 = vst.msk [vmem:[#allocation3 + $0x58] sm:$0xff] %vm998, %v925
      %1011 = vst.msk [vmem:[#allocation3 + $0x60] sm:$0xff] %vm998, %v927
      %1012 = vst.msk [vmem:[#allocation3 + $0x68] sm:$0xff] %vm998, %v929
      %1013 = vst.msk [vmem:[#allocation3 + $0x70] sm:$0xff] %vm998, %v931
      %1014 = vst.msk [vmem:[#allocation3 + $0x78] sm:$0xff] %vm998, %v933
      %1015 = vst.msk [vmem:[#allocation3 + $0x80] sm:$0xff] %vm998, %v935
      %1016 = vst.msk [vmem:[#allocation3 + $0x88] sm:$0xff] %vm998, %v937
      %1017 = vst.msk [vmem:[#allocation3 + $0x90] sm:$0xff] %vm998, %v939
      %1018 = vst.msk [vmem:[#allocation3 + $0x98] sm:$0xff] %vm998, %v941
      %1019 = vst.msk [vmem:[#allocation3 + $0xa0] sm:$0xff] %vm998, %v943
      %1020 = vst.msk [vmem:[#allocation3 + $0xa8] sm:$0xff] %vm998, %v945
      %1021 = vst.msk [vmem:[#allocation3 + $0xb0] sm:$0xff] %vm998, %v947
      %1022 = vst.msk [vmem:[#allocation3 + $0xb8] sm:$0xff] %vm998, %v949
      %1023 = vst.msk [vmem:[#allocation3 + $0xc0] sm:$0xff] %vm998, %v951
      %1024 = vst.msk [vmem:[#allocation3 + $0xc8] sm:$0xff] %vm998, %v953
      %1025 = vst.msk [vmem:[#allocation3 + $0xd0] sm:$0xff] %vm998, %v955
      %1026 = vst.msk [vmem:[#allocation3 + $0xd8] sm:$0xff] %vm998, %v957
      %1027 = vst.msk [vmem:[#allocation3 + $0xe0] sm:$0xff] %vm998, %v959
      %1028 = vst.msk [vmem:[#allocation3 + $0xe8] sm:$0xff] %vm998, %v961
      %1029 = vst.msk [vmem:[#allocation3 + $0xf0] sm:$0xff] %vm998, %v963
      %1030 = vst.msk [vmem:[#allocation3 + $0xf8] sm:$0xff] %vm998, %v965
      %v1032 = vrot.slane %v394, 1
      %v1033 = vrot.slane %v395, 1
      %v1034 = vsel %vm480, %v1032, %v1033
      %v1035 = vrot.slane %v396, 1
      %v1036 = vsel %vm480, %v1033, %v1035
      %1037 = vrot.lane.b32.xlu0 %v488, 16
      %v1038 = vpop.permute.xlu0 %1037
      %1039 = vrot.lane.b32.xlu0 %v490, 16
      %v1040 = vpop.permute.xlu0 %1039
      %1041 = vrot.lane.b32.xlu0 %v493, 16
      %v1042 = vpop.permute.xlu0 %1041
      %1043 = vrot.lane.b32.xlu0 %v495, 16
      %v1044 = vpop.permute.xlu0 %1043
      %1045 = vrot.lane.b32.xlu0 %v498, 16
      %v1046 = vpop.permute.xlu0 %1045
      %1047 = vrot.lane.b32.xlu0 %v500, 16
      %v1048 = vpop.permute.xlu0 %1047
      %1049 = vrot.lane.b32.xlu0 %v503, 16
      %v1050 = vpop.permute.xlu0 %1049
      %1051 = vrot.lane.b32.xlu0 %v505, 16
      %v1052 = vpop.permute.xlu0 %1051
      %1053 = vrot.lane.b32.xlu0 %v508, 16
      %v1054 = vpop.permute.xlu0 %1053
      %1055 = vrot.lane.b32.xlu0 %v510, 16
      %v1056 = vpop.permute.xlu0 %1055
      %1057 = vrot.lane.b32.xlu0 %v513, 16
      %v1058 = vpop.permute.xlu0 %1057
      %1059 = vrot.lane.b32.xlu0 %v515, 16
      %v1060 = vpop.permute.xlu0 %1059
      %1061 = vrot.lane.b32.xlu0 %v518, 16
      %v1062 = vpop.permute.xlu0 %1061
      %1063 = vrot.lane.b32.xlu0 %v520, 16
      %v1064 = vpop.permute.xlu0 %1063
      %1065 = vrot.lane.b32.xlu0 %v523, 16
      %v1066 = vpop.permute.xlu0 %1065
      %1067 = vrot.lane.b32.xlu0 %v525, 16
      %v1068 = vpop.permute.xlu0 %1067
      %1069 = vrot.lane.b32.xlu0 %v528, 16
      %v1070 = vpop.permute.xlu0 %1069
      %1071 = vrot.lane.b32.xlu0 %v530, 16
      %v1072 = vpop.permute.xlu0 %1071
      %1073 = vrot.lane.b32.xlu0 %v533, 16
      %v1074 = vpop.permute.xlu0 %1073
      %1075 = vrot.lane.b32.xlu0 %v535, 16
      %v1076 = vpop.permute.xlu0 %1075
      %1077 = vrot.lane.b32.xlu0 %v538, 16
      %v1078 = vpop.permute.xlu0 %1077
      %1079 = vrot.lane.b32.xlu0 %v540, 16
      %v1080 = vpop.permute.xlu0 %1079
      %1081 = vrot.lane.b32.xlu0 %v543, 16
      %v1082 = vpop.permute.xlu0 %1081
      %1083 = vrot.lane.b32.xlu0 %v545, 16
      %v1084 = vpop.permute.xlu0 %1083
      %1085 = vrot.lane.b32.xlu0 %v548, 16
      %v1086 = vpop.permute.xlu0 %1085
      %1087 = vrot.lane.b32.xlu0 %v550, 16
      %v1088 = vpop.permute.xlu0 %1087
      %1089 = vrot.lane.b32.xlu0 %v553, 16
      %v1090 = vpop.permute.xlu0 %1089
      %1091 = vrot.lane.b32.xlu0 %v555, 16
      %v1092 = vpop.permute.xlu0 %1091
      %1093 = vrot.lane.b32.xlu0 %v558, 16
      %v1094 = vpop.permute.xlu0 %1093
      %1095 = vrot.lane.b32.xlu0 %v560, 16
      %v1096 = vpop.permute.xlu0 %1095
      %1097 = vrot.lane.b32.xlu0 %v1034, 16
      %v1098 = vpop.permute.xlu0 %1097
      %1099 = vrot.lane.b32.xlu0 %v1036, 16
      %v1100 = vpop.permute.xlu0 %1099
      %vm1133 = vcmask 162944
      %1134 = vst.msk [vmem:[#allocation3] sm:$0xff] %vm1133, %v1038
      %1135 = vst.msk [vmem:[#allocation3 + $0x8] sm:$0xff] %vm1133, %v1040
      %1136 = vst.msk [vmem:[#allocation3 + $0x10] sm:$0xff] %vm1133, %v1042
      %1137 = vst.msk [vmem:[#allocation3 + $0x18] sm:$0xff] %vm1133, %v1044
      %1138 = vst.msk [vmem:[#allocation3 + $0x20] sm:$0xff] %vm1133, %v1046
      %1139 = vst.msk [vmem:[#allocation3 + $0x28] sm:$0xff] %vm1133, %v1048
      %1140 = vst.msk [vmem:[#allocation3 + $0x30] sm:$0xff] %vm1133, %v1050
      %1141 = vst.msk [vmem:[#allocation3 + $0x38] sm:$0xff] %vm1133, %v1052
      %1142 = vst.msk [vmem:[#allocation3 + $0x40] sm:$0xff] %vm1133, %v1054
      %1143 = vst.msk [vmem:[#allocation3 + $0x48] sm:$0xff] %vm1133, %v1056
      %1144 = vst.msk [vmem:[#allocation3 + $0x50] sm:$0xff] %vm1133, %v1058
      %1145 = vst.msk [vmem:[#allocation3 + $0x58] sm:$0xff] %vm1133, %v1060
      %1146 = vst.msk [vmem:[#allocation3 + $0x60] sm:$0xff] %vm1133, %v1062
      %1147 = vst.msk [vmem:[#allocation3 + $0x68] sm:$0xff] %vm1133, %v1064
      %1148 = vst.msk [vmem:[#allocation3 + $0x70] sm:$0xff] %vm1133, %v1066
      %1149 = vst.msk [vmem:[#allocation3 + $0x78] sm:$0xff] %vm1133, %v1068
      %1150 = vst.msk [vmem:[#allocation3 + $0x80] sm:$0xff] %vm1133, %v1070
      %1151 = vst.msk [vmem:[#allocation3 + $0x88] sm:$0xff] %vm1133, %v1072
      %1152 = vst.msk [vmem:[#allocation3 + $0x90] sm:$0xff] %vm1133, %v1074
      %1153 = vst.msk [vmem:[#allocation3 + $0x98] sm:$0xff] %vm1133, %v1076
      %1154 = vst.msk [vmem:[#allocation3 + $0xa0] sm:$0xff] %vm1133, %v1078
      %1155 = vst.msk [vmem:[#allocation3 + $0xa8] sm:$0xff] %vm1133, %v1080
      %1156 = vst.msk [vmem:[#allocation3 + $0xb0] sm:$0xff] %vm1133, %v1082
      %1157 = vst.msk [vmem:[#allocation3 + $0xb8] sm:$0xff] %vm1133, %v1084
      %1158 = vst.msk [vmem:[#allocation3 + $0xc0] sm:$0xff] %vm1133, %v1086
      %1159 = vst.msk [vmem:[#allocation3 + $0xc8] sm:$0xff] %vm1133, %v1088
      %1160 = vst.msk [vmem:[#allocation3 + $0xd0] sm:$0xff] %vm1133, %v1090
      %1161 = vst.msk [vmem:[#allocation3 + $0xd8] sm:$0xff] %vm1133, %v1092
      %1162 = vst.msk [vmem:[#allocation3 + $0xe0] sm:$0xff] %vm1133, %v1094
      %1163 = vst.msk [vmem:[#allocation3 + $0xe8] sm:$0xff] %vm1133, %v1096
      %1164 = vst.msk [vmem:[#allocation3 + $0xf0] sm:$0xff] %vm1133, %v1098
      %1165 = vst.msk [vmem:[#allocation3 + $0xf8] sm:$0xff] %vm1133, %v1100
      %v1166 = vrot.slane %v394, 2
      %v1167 = vrot.slane %v395, 2
      %v1168 = vsel %vm690, %v1166, %v1167
      %v1169 = vrot.slane %v396, 2
      %v1170 = vsel %vm690, %v1167, %v1169
      %1171 = vrot.lane.b32.xlu0 %v698, 20
      %v1172 = vpop.permute.xlu0 %1171
      %1173 = vrot.lane.b32.xlu0 %v700, 20
      %v1174 = vpop.permute.xlu0 %1173
      %1175 = vrot.lane.b32.xlu0 %v703, 20
      %v1176 = vpop.permute.xlu0 %1175
      %1177 = vrot.lane.b32.xlu0 %v705, 20
      %v1178 = vpop.permute.xlu0 %1177
      %1179 = vrot.lane.b32.xlu0 %v708, 20
      %v1180 = vpop.permute.xlu0 %1179
      %1181 = vrot.lane.b32.xlu0 %v710, 20
      %v1182 = vpop.permute.xlu0 %1181
      %1183 = vrot.lane.b32.xlu0 %v713, 20
      %v1184 = vpop.permute.xlu0 %1183
      %1185 = vrot.lane.b32.xlu0 %v715, 20
      %v1186 = vpop.permute.xlu0 %1185
      %1187 = vrot.lane.b32.xlu0 %v718, 20
      %v1188 = vpop.permute.xlu0 %1187
      %1189 = vrot.lane.b32.xlu0 %v720, 20
      %v1190 = vpop.permute.xlu0 %1189
      %1191 = vrot.lane.b32.xlu0 %v723, 20
      %v1192 = vpop.permute.xlu0 %1191
      %1193 = vrot.lane.b32.xlu0 %v725, 20
      %v1194 = vpop.permute.xlu0 %1193
      %1195 = vrot.lane.b32.xlu0 %v728, 20
      %v1196 = vpop.permute.xlu0 %1195
      %1197 = vrot.lane.b32.xlu0 %v730, 20
      %v1198 = vpop.permute.xlu0 %1197
      %1199 = vrot.lane.b32.xlu0 %v733, 20
      %v1200 = vpop.permute.xlu0 %1199
      %1201 = vrot.lane.b32.xlu0 %v735, 20
      %v1202 = vpop.permute.xlu0 %1201
      %1203 = vrot.lane.b32.xlu0 %v738, 20
      %v1204 = vpop.permute.xlu0 %1203
      %1205 = vrot.lane.b32.xlu0 %v740, 20
      %v1206 = vpop.permute.xlu0 %1205
      %1207 = vrot.lane.b32.xlu0 %v743, 20
      %v1208 = vpop.permute.xlu0 %1207
      %1209 = vrot.lane.b32.xlu0 %v745, 20
      %v1210 = vpop.permute.xlu0 %1209
      %1211 = vrot.lane.b32.xlu0 %v748, 20
      %v1212 = vpop.permute.xlu0 %1211
      %1213 = vrot.lane.b32.xlu0 %v750, 20
      %v1214 = vpop.permute.xlu0 %1213
      %1215 = vrot.lane.b32.xlu0 %v753, 20
      %v1216 = vpop.permute.xlu0 %1215
      %1217 = vrot.lane.b32.xlu0 %v755, 20
      %v1218 = vpop.permute.xlu0 %1217
      %1219 = vrot.lane.b32.xlu0 %v758, 20
      %v1220 = vpop.permute.xlu0 %1219
      %1221 = vrot.lane.b32.xlu0 %v760, 20
      %v1222 = vpop.permute.xlu0 %1221
      %1223 = vrot.lane.b32.xlu0 %v763, 20
      %v1224 = vpop.permute.xlu0 %1223
      %1225 = vrot.lane.b32.xlu0 %v765, 20
      %v1226 = vpop.permute.xlu0 %1225
      %1227 = vrot.lane.b32.xlu0 %v768, 20
      %v1228 = vpop.permute.xlu0 %1227
      %1229 = vrot.lane.b32.xlu0 %v770, 20
      %v1230 = vpop.permute.xlu0 %1229
      %1231 = vrot.lane.b32.xlu0 %v1168, 20
      %v1232 = vpop.permute.xlu0 %1231
      %1233 = vrot.lane.b32.xlu0 %v1170, 20
      %v1234 = vpop.permute.xlu0 %1233
      %vm1267 = vcmask 195744
      %1268 = vst.msk [vmem:[#allocation3] sm:$0xff] %vm1267, %v1172
      %1269 = vst.msk [vmem:[#allocation3 + $0x8] sm:$0xff] %vm1267, %v1174
      %1270 = vst.msk [vmem:[#allocation3 + $0x10] sm:$0xff] %vm1267, %v1176
      %1271 = vst.msk [vmem:[#allocation3 + $0x18] sm:$0xff] %vm1267, %v1178
      %1272 = vst.msk [vmem:[#allocation3 + $0x20] sm:$0xff] %vm1267, %v1180
      %1273 = vst.msk [vmem:[#allocation3 + $0x28] sm:$0xff] %vm1267, %v1182
      %1274 = vst.msk [vmem:[#allocation3 + $0x30] sm:$0xff] %vm1267, %v1184
      %1275 = vst.msk [vmem:[#allocation3 + $0x38] sm:$0xff] %vm1267, %v1186
      %1276 = vst.msk [vmem:[#allocation3 + $0x40] sm:$0xff] %vm1267, %v1188
      %1277 = vst.msk [vmem:[#allocation3 + $0x48] sm:$0xff] %vm1267, %v1190
      %1278 = vst.msk [vmem:[#allocation3 + $0x50] sm:$0xff] %vm1267, %v1192
      %1279 = vst.msk [vmem:[#allocation3 + $0x58] sm:$0xff] %vm1267, %v1194
      %1280 = vst.msk [vmem:[#allocation3 + $0x60] sm:$0xff] %vm1267, %v1196
      %1281 = vst.msk [vmem:[#allocation3 + $0x68] sm:$0xff] %vm1267, %v1198
      %1282 = vst.msk [vmem:[#allocation3 + $0x70] sm:$0xff] %vm1267, %v1200
      %1283 = vst.msk [vmem:[#allocation3 + $0x78] sm:$0xff] %vm1267, %v1202
      %1284 = vst.msk [vmem:[#allocation3 + $0x80] sm:$0xff] %vm1267, %v1204
      %1285 = vst.msk [vmem:[#allocation3 + $0x88] sm:$0xff] %vm1267, %v1206
      %1286 = vst.msk [vmem:[#allocation3 + $0x90] sm:$0xff] %vm1267, %v1208
      %1287 = vst.msk [vmem:[#allocation3 + $0x98] sm:$0xff] %vm1267, %v1210
      %1288 = vst.msk [vmem:[#allocation3 + $0xa0] sm:$0xff] %vm1267, %v1212
      %1289 = vst.msk [vmem:[#allocation3 + $0xa8] sm:$0xff] %vm1267, %v1214
      %1290 = vst.msk [vmem:[#allocation3 + $0xb0] sm:$0xff] %vm1267, %v1216
      %1291 = vst.msk [vmem:[#allocation3 + $0xb8] sm:$0xff] %vm1267, %v1218
      %1292 = vst.msk [vmem:[#allocation3 + $0xc0] sm:$0xff] %vm1267, %v1220
      %1293 = vst.msk [vmem:[#allocation3 + $0xc8] sm:$0xff] %vm1267, %v1222
      %1294 = vst.msk [vmem:[#allocation3 + $0xd0] sm:$0xff] %vm1267, %v1224
      %1295 = vst.msk [vmem:[#allocation3 + $0xd8] sm:$0xff] %vm1267, %v1226
      %1296 = vst.msk [vmem:[#allocation3 + $0xe0] sm:$0xff] %vm1267, %v1228
      %1297 = vst.msk [vmem:[#allocation3 + $0xe8] sm:$0xff] %vm1267, %v1230
      %1298 = vst.msk [vmem:[#allocation3 + $0xf0] sm:$0xff] %vm1267, %v1232
      %1299 = vst.msk [vmem:[#allocation3 + $0xf8] sm:$0xff] %vm1267, %v1234
      %1302 = vrot.lane.b32.xlu0 %v352, 24
      %v1303 = vpop.permute.xlu0 %1302
      %1304 = vrot.lane.b32.xlu0 %v353, 24
      %v1305 = vpop.permute.xlu0 %1304
      %1306 = vrot.lane.b32.xlu0 %v355, 24
      %v1307 = vpop.permute.xlu0 %1306
      %1308 = vrot.lane.b32.xlu0 %v356, 24
      %v1309 = vpop.permute.xlu0 %1308
      %1310 = vrot.lane.b32.xlu0 %v358, 24
      %v1311 = vpop.permute.xlu0 %1310
      %1312 = vrot.lane.b32.xlu0 %v359, 24
      %v1313 = vpop.permute.xlu0 %1312
      %1314 = vrot.lane.b32.xlu0 %v361, 24
      %v1315 = vpop.permute.xlu0 %1314
      %1316 = vrot.lane.b32.xlu0 %v362, 24
      %v1317 = vpop.permute.xlu0 %1316
      %1318 = vrot.lane.b32.xlu0 %v364, 24
      %v1319 = vpop.permute.xlu0 %1318
      %1320 = vrot.lane.b32.xlu0 %v365, 24
      %v1321 = vpop.permute.xlu0 %1320
      %1322 = vrot.lane.b32.xlu0 %v367, 24
      %v1323 = vpop.permute.xlu0 %1322
      %1324 = vrot.lane.b32.xlu0 %v368, 24
      %v1325 = vpop.permute.xlu0 %1324
      %1326 = vrot.lane.b32.xlu0 %v370, 24
      %v1327 = vpop.permute.xlu0 %1326
      %1328 = vrot.lane.b32.xlu0 %v371, 24
      %v1329 = vpop.permute.xlu0 %1328
      %1330 = vrot.lane.b32.xlu0 %v373, 24
      %v1331 = vpop.permute.xlu0 %1330
      %1332 = vrot.lane.b32.xlu0 %v374, 24
      %v1333 = vpop.permute.xlu0 %1332
      %1334 = vrot.lane.b32.xlu0 %v376, 24
      %v1335 = vpop.permute.xlu0 %1334
      %1336 = vrot.lane.b32.xlu0 %v377, 24
      %v1337 = vpop.permute.xlu0 %1336
      %1338 = vrot.lane.b32.xlu0 %v379, 24
      %v1339 = vpop.permute.xlu0 %1338
      %1340 = vrot.lane.b32.xlu0 %v380, 24
      %v1341 = vpop.permute.xlu0 %1340
      %1342 = vrot.lane.b32.xlu0 %v382, 24
      %v1343 = vpop.permute.xlu0 %1342
      %1344 = vrot.lane.b32.xlu0 %v383, 24
      %v1345 = vpop.permute.xlu0 %1344
      %1346 = vrot.lane.b32.xlu0 %v385, 24
      %v1347 = vpop.permute.xlu0 %1346
      %1348 = vrot.lane.b32.xlu0 %v386, 24
      %v1349 = vpop.permute.xlu0 %1348
      %1350 = vrot.lane.b32.xlu0 %v388, 24
      %v1351 = vpop.permute.xlu0 %1350
      %1352 = vrot.lane.b32.xlu0 %v389, 24
      %v1353 = vpop.permute.xlu0 %1352
      %1354 = vrot.lane.b32.xlu0 %v391, 24
      %v1355 = vpop.permute.xlu0 %1354
      %1356 = vrot.lane.b32.xlu0 %v392, 24
      %v1357 = vpop.permute.xlu0 %1356
      %1358 = vrot.lane.b32.xlu0 %v394, 24
      %v1359 = vpop.permute.xlu0 %1358
      %1360 = vrot.lane.b32.xlu0 %v395, 24
      %v1361 = vpop.permute.xlu0 %1360
      %1362 = vrot.lane.b32.xlu0 %v397, 24
      %v1363 = vpop.permute.xlu0 %1362
      %1364 = vrot.lane.b32.xlu0 %v398, 24
      %v1365 = vpop.permute.xlu0 %1364
      %vm1398 = vcmask 228544
      %1399 = vst.msk [vmem:[#allocation3] sm:$0xff] %vm1398, %v1303
      %1400 = vst.msk [vmem:[#allocation3 + $0x8] sm:$0xff] %vm1398, %v1305
      %1401 = vst.msk [vmem:[#allocation3 + $0x10] sm:$0xff] %vm1398, %v1307
      %1402 = vst.msk [vmem:[#allocation3 + $0x18] sm:$0xff] %vm1398, %v1309
      %1403 = vst.msk [vmem:[#allocation3 + $0x20] sm:$0xff] %vm1398, %v1311
      %1404 = vst.msk [vmem:[#allocation3 + $0x28] sm:$0xff] %vm1398, %v1313
      %1405 = vst.msk [vmem:[#allocation3 + $0x30] sm:$0xff] %vm1398, %v1315
      %1406 = vst.msk [vmem:[#allocation3 + $0x38] sm:$0xff] %vm1398, %v1317
      %1407 = vst.msk [vmem:[#allocation3 + $0x40] sm:$0xff] %vm1398, %v1319
      %1408 = vst.msk [vmem:[#allocation3 + $0x48] sm:$0xff] %vm1398, %v1321
      %1409 = vst.msk [vmem:[#allocation3 + $0x50] sm:$0xff] %vm1398, %v1323
      %1410 = vst.msk [vmem:[#allocation3 + $0x58] sm:$0xff] %vm1398, %v1325
      %1411 = vst.msk [vmem:[#allocation3 + $0x60] sm:$0xff] %vm1398, %v1327
      %1412 = vst.msk [vmem:[#allocation3 + $0x68] sm:$0xff] %vm1398, %v1329
      %1413 = vst.msk [vmem:[#allocation3 + $0x70] sm:$0xff] %vm1398, %v1331
      %1414 = vst.msk [vmem:[#allocation3 + $0x78] sm:$0xff] %vm1398, %v1333
      %1415 = vst.msk [vmem:[#allocation3 + $0x80] sm:$0xff] %vm1398, %v1335
      %1416 = vst.msk [vmem:[#allocation3 + $0x88] sm:$0xff] %vm1398, %v1337
      %1417 = vst.msk [vmem:[#allocation3 + $0x90] sm:$0xff] %vm1398, %v1339
      %1418 = vst.msk [vmem:[#allocation3 + $0x98] sm:$0xff] %vm1398, %v1341
      %1419 = vst.msk [vmem:[#allocation3 + $0xa0] sm:$0xff] %vm1398, %v1343
      %1420 = vst.msk [vmem:[#allocation3 + $0xa8] sm:$0xff] %vm1398, %v1345
      %1421 = vst.msk [vmem:[#allocation3 + $0xb0] sm:$0xff] %vm1398, %v1347
      %1422 = vst.msk [vmem:[#allocation3 + $0xb8] sm:$0xff] %vm1398, %v1349
      %1423 = vst.msk [vmem:[#allocation3 + $0xc0] sm:$0xff] %vm1398, %v1351
      %1424 = vst.msk [vmem:[#allocation3 + $0xc8] sm:$0xff] %vm1398, %v1353
      %1425 = vst.msk [vmem:[#allocation3 + $0xd0] sm:$0xff] %vm1398, %v1355
      %1426 = vst.msk [vmem:[#allocation3 + $0xd8] sm:$0xff] %vm1398, %v1357
      %1427 = vst.msk [vmem:[#allocation3 + $0xe0] sm:$0xff] %vm1398, %v1359
      %1428 = vst.msk [vmem:[#allocation3 + $0xe8] sm:$0xff] %vm1398, %v1361
      %1429 = vst.msk [vmem:[#allocation3 + $0xf0] sm:$0xff] %vm1398, %v1363
      %1430 = vst.msk [vmem:[#allocation3 + $0xf8] sm:$0xff] %vm1398, %v1365
      %v1432 = vrot.slane %v397, 1
      %v1433 = vrot.slane %v398, 1
      %v1434 = vsel %vm480, %v1432, %v1433
      %v1435 = vrot.slane %v399, 1
      %v1436 = vsel %vm480, %v1433, %v1435
      %1437 = vrot.lane.b32.xlu0 %v493, 28
      %v1438 = vpop.permute.xlu0 %1437
      %1439 = vrot.lane.b32.xlu0 %v495, 28
      %v1440 = vpop.permute.xlu0 %1439
      %1441 = vrot.lane.b32.xlu0 %v498, 28
      %v1442 = vpop.permute.xlu0 %1441
      %1443 = vrot.lane.b32.xlu0 %v500, 28
      %v1444 = vpop.permute.xlu0 %1443
      %1445 = vrot.lane.b32.xlu0 %v503, 28
      %v1446 = vpop.permute.xlu0 %1445
      %1447 = vrot.lane.b32.xlu0 %v505, 28
      %v1448 = vpop.permute.xlu0 %1447
      %1449 = vrot.lane.b32.xlu0 %v508, 28
      %v1450 = vpop.permute.xlu0 %1449
      %1451 = vrot.lane.b32.xlu0 %v510, 28
      %v1452 = vpop.permute.xlu0 %1451
      %1453 = vrot.lane.b32.xlu0 %v513, 28
      %v1454 = vpop.permute.xlu0 %1453
      %1455 = vrot.lane.b32.xlu0 %v515, 28
      %v1456 = vpop.permute.xlu0 %1455
      %1457 = vrot.lane.b32.xlu0 %v518, 28
      %v1458 = vpop.permute.xlu0 %1457
      %1459 = vrot.lane.b32.xlu0 %v520, 28
      %v1460 = vpop.permute.xlu0 %1459
      %1461 = vrot.lane.b32.xlu0 %v523, 28
      %v1462 = vpop.permute.xlu0 %1461
      %1463 = vrot.lane.b32.xlu0 %v525, 28
      %v1464 = vpop.permute.xlu0 %1463
      %1465 = vrot.lane.b32.xlu0 %v528, 28
      %v1466 = vpop.permute.xlu0 %1465
      %1467 = vrot.lane.b32.xlu0 %v530, 28
      %v1468 = vpop.permute.xlu0 %1467
      %1469 = vrot.lane.b32.xlu0 %v533, 28
      %v1470 = vpop.permute.xlu0 %1469
      %1471 = vrot.lane.b32.xlu0 %v535, 28
      %v1472 = vpop.permute.xlu0 %1471
      %1473 = vrot.lane.b32.xlu0 %v538, 28
      %v1474 = vpop.permute.xlu0 %1473
      %1475 = vrot.lane.b32.xlu0 %v540, 28
      %v1476 = vpop.permute.xlu0 %1475
      %1477 = vrot.lane.b32.xlu0 %v543, 28
      %v1478 = vpop.permute.xlu0 %1477
      %1479 = vrot.lane.b32.xlu0 %v545, 28
      %v1480 = vpop.permute.xlu0 %1479
      %1481 = vrot.lane.b32.xlu0 %v548, 28
      %v1482 = vpop.permute.xlu0 %1481
      %1483 = vrot.lane.b32.xlu0 %v550, 28
      %v1484 = vpop.permute.xlu0 %1483
      %1485 = vrot.lane.b32.xlu0 %v553, 28
      %v1486 = vpop.permute.xlu0 %1485
      %1487 = vrot.lane.b32.xlu0 %v555, 28
      %v1488 = vpop.permute.xlu0 %1487
      %1489 = vrot.lane.b32.xlu0 %v558, 28
      %v1490 = vpop.permute.xlu0 %1489
      %1491 = vrot.lane.b32.xlu0 %v560, 28
      %v1492 = vpop.permute.xlu0 %1491
      %1493 = vrot.lane.b32.xlu0 %v1034, 28
      %v1494 = vpop.permute.xlu0 %1493
      %1495 = vrot.lane.b32.xlu0 %v1036, 28
      %v1496 = vpop.permute.xlu0 %1495
      %1497 = vrot.lane.b32.xlu0 %v1434, 28
      %v1498 = vpop.permute.xlu0 %1497
      %1499 = vrot.lane.b32.xlu0 %v1436, 28
      %v1500 = vpop.permute.xlu0 %1499
      %vm1533 = vcmask 261344
      %1534 = vst.msk [vmem:[#allocation3] sm:$0xff] %vm1533, %v1438
      %1535 = vst.msk [vmem:[#allocation3 + $0x8] sm:$0xff] %vm1533, %v1440
      %1536 = vst.msk [vmem:[#allocation3 + $0x10] sm:$0xff] %vm1533, %v1442
      %1537 = vst.msk [vmem:[#allocation3 + $0x18] sm:$0xff] %vm1533, %v1444
      %1538 = vst.msk [vmem:[#allocation3 + $0x20] sm:$0xff] %vm1533, %v1446
      %1539 = vst.msk [vmem:[#allocation3 + $0x28] sm:$0xff] %vm1533, %v1448
      %1540 = vst.msk [vmem:[#allocation3 + $0x30] sm:$0xff] %vm1533, %v1450
      %1541 = vst.msk [vmem:[#allocation3 + $0x38] sm:$0xff] %vm1533, %v1452
      %1542 = vst.msk [vmem:[#allocation3 + $0x40] sm:$0xff] %vm1533, %v1454
      %1543 = vst.msk [vmem:[#allocation3 + $0x48] sm:$0xff] %vm1533, %v1456
      %1544 = vst.msk [vmem:[#allocation3 + $0x50] sm:$0xff] %vm1533, %v1458
      %1545 = vst.msk [vmem:[#allocation3 + $0x58] sm:$0xff] %vm1533, %v1460
      %1546 = vst.msk [vmem:[#allocation3 + $0x60] sm:$0xff] %vm1533, %v1462
      %1547 = vst.msk [vmem:[#allocation3 + $0x68] sm:$0xff] %vm1533, %v1464
      %1548 = vst.msk [vmem:[#allocation3 + $0x70] sm:$0xff] %vm1533, %v1466
      %1549 = vst.msk [vmem:[#allocation3 + $0x78] sm:$0xff] %vm1533, %v1468
      %1550 = vst.msk [vmem:[#allocation3 + $0x80] sm:$0xff] %vm1533, %v1470
      %1551 = vst.msk [vmem:[#allocation3 + $0x88] sm:$0xff] %vm1533, %v1472
      %1552 = vst.msk [vmem:[#allocation3 + $0x90] sm:$0xff] %vm1533, %v1474
      %1553 = vst.msk [vmem:[#allocation3 + $0x98] sm:$0xff] %vm1533, %v1476
      %1554 = vst.msk [vmem:[#allocation3 + $0xa0] sm:$0xff] %vm1533, %v1478
      %1555 = vst.msk [vmem:[#allocation3 + $0xa8] sm:$0xff] %vm1533, %v1480
      %1556 = vst.msk [vmem:[#allocation3 + $0xb0] sm:$0xff] %vm1533, %v1482
      %1557 = vst.msk [vmem:[#allocation3 + $0xb8] sm:$0xff] %vm1533, %v1484
      %1558 = vst.msk [vmem:[#allocation3 + $0xc0] sm:$0xff] %vm1533, %v1486
      %1559 = vst.msk [vmem:[#allocation3 + $0xc8] sm:$0xff] %vm1533, %v1488
      %1560 = vst.msk [vmem:[#allocation3 + $0xd0] sm:$0xff] %vm1533, %v1490
      %1561 = vst.msk [vmem:[#allocation3 + $0xd8] sm:$0xff] %vm1533, %v1492
      %1562 = vst.msk [vmem:[#allocation3 + $0xe0] sm:$0xff] %vm1533, %v1494
      %1563 = vst.msk [vmem:[#allocation3 + $0xe8] sm:$0xff] %vm1533, %v1496
      %1564 = vst.msk [vmem:[#allocation3 + $0xf0] sm:$0xff] %vm1533, %v1498
      %1565 = vst.msk [vmem:[#allocation3 + $0xf8] sm:$0xff] %vm1533, %v1500
      %v1566 = vrot.slane %v397, 2
      %v1567 = vrot.slane %v398, 2
      %v1568 = vsel %vm690, %v1566, %v1567
      %v1569 = vrot.slane %v399, 2
      %v1570 = vsel %vm690, %v1567, %v1569
      %1571 = vrot.lane.b32.xlu0 %v703, 32
      %v1572 = vpop.permute.xlu0 %1571
      %1573 = vrot.lane.b32.xlu0 %v705, 32
      %v1574 = vpop.permute.xlu0 %1573
      %1575 = vrot.lane.b32.xlu0 %v708, 32
      %v1576 = vpop.permute.xlu0 %1575
      %1577 = vrot.lane.b32.xlu0 %v710, 32
      %v1578 = vpop.permute.xlu0 %1577
      %1579 = vrot.lane.b32.xlu0 %v713, 32
      %v1580 = vpop.permute.xlu0 %1579
      %1581 = vrot.lane.b32.xlu0 %v715, 32
      %v1582 = vpop.permute.xlu0 %1581
      %1583 = vrot.lane.b32.xlu0 %v718, 32
      %v1584 = vpop.permute.xlu0 %1583
      %1585 = vrot.lane.b32.xlu0 %v720, 32
      %v1586 = vpop.permute.xlu0 %1585
      %1587 = vrot.lane.b32.xlu0 %v723, 32
      %v1588 = vpop.permute.xlu0 %1587
      %1589 = vrot.lane.b32.xlu0 %v725, 32
      %v1590 = vpop.permute.xlu0 %1589
      %1591 = vrot.lane.b32.xlu0 %v728, 32
      %v1592 = vpop.permute.xlu0 %1591
      %1593 = vrot.lane.b32.xlu0 %v730, 32
      %v1594 = vpop.permute.xlu0 %1593
      %1595 = vrot.lane.b32.xlu0 %v733, 32
      %v1596 = vpop.permute.xlu0 %1595
      %1597 = vrot.lane.b32.xlu0 %v735, 32
      %v1598 = vpop.permute.xlu0 %1597
      %1599 = vrot.lane.b32.xlu0 %v738, 32
      %v1600 = vpop.permute.xlu0 %1599
      %1601 = vrot.lane.b32.xlu0 %v740, 32
      %v1602 = vpop.permute.xlu0 %1601
      %1603 = vrot.lane.b32.xlu0 %v743, 32
      %v1604 = vpop.permute.xlu0 %1603
      %1605 = vrot.lane.b32.xlu0 %v745, 32
      %v1606 = vpop.permute.xlu0 %1605
      %1607 = vrot.lane.b32.xlu0 %v748, 32
      %v1608 = vpop.permute.xlu0 %1607
      %1609 = vrot.lane.b32.xlu0 %v750, 32
      %v1610 = vpop.permute.xlu0 %1609
      %1611 = vrot.lane.b32.xlu0 %v753, 32
      %v1612 = vpop.permute.xlu0 %1611
      %1613 = vrot.lane.b32.xlu0 %v755, 32
      %v1614 = vpop.permute.xlu0 %1613
      %1615 = vrot.lane.b32.xlu0 %v758, 32
      %v1616 = vpop.permute.xlu0 %1615
      %1617 = vrot.lane.b32.xlu0 %v760, 32
      %v1618 = vpop.permute.xlu0 %1617
      %1619 = vrot.lane.b32.xlu0 %v763, 32
      %v1620 = vpop.permute.xlu0 %1619
      %1621 = vrot.lane.b32.xlu0 %v765, 32
      %v1622 = vpop.permute.xlu0 %1621
      %1623 = vrot.lane.b32.xlu0 %v768, 32
      %v1624 = vpop.permute.xlu0 %1623
      %1625 = vrot.lane.b32.xlu0 %v770, 32
      %v1626 = vpop.permute.xlu0 %1625
      %1627 = vrot.lane.b32.xlu0 %v1168, 32
      %v1628 = vpop.permute.xlu0 %1627
      %1629 = vrot.lane.b32.xlu0 %v1170, 32
      %v1630 = vpop.permute.xlu0 %1629
      %1631 = vrot.lane.b32.xlu0 %v1568, 32
      %v1632 = vpop.permute.xlu0 %1631
      %1633 = vrot.lane.b32.xlu0 %v1570, 32
      %v1634 = vpop.permute.xlu0 %1633
      %vm1667 = vcmask 294144
      %1668 = vst.msk [vmem:[#allocation3] sm:$0xff] %vm1667, %v1572
      %1669 = vst.msk [vmem:[#allocation3 + $0x8] sm:$0xff] %vm1667, %v1574
      %1670 = vst.msk [vmem:[#allocation3 + $0x10] sm:$0xff] %vm1667, %v1576
      %1671 = vst.msk [vmem:[#allocation3 + $0x18] sm:$0xff] %vm1667, %v1578
      %1672 = vst.msk [vmem:[#allocation3 + $0x20] sm:$0xff] %vm1667, %v1580
      %1673 = vst.msk [vmem:[#allocation3 + $0x28] sm:$0xff] %vm1667, %v1582
      %1674 = vst.msk [vmem:[#allocation3 + $0x30] sm:$0xff] %vm1667, %v1584
      %1675 = vst.msk [vmem:[#allocation3 + $0x38] sm:$0xff] %vm1667, %v1586
      %1676 = vst.msk [vmem:[#allocation3 + $0x40] sm:$0xff] %vm1667, %v1588
      %1677 = vst.msk [vmem:[#allocation3 + $0x48] sm:$0xff] %vm1667, %v1590
      %1678 = vst.msk [vmem:[#allocation3 + $0x50] sm:$0xff] %vm1667, %v1592
      %1679 = vst.msk [vmem:[#allocation3 + $0x58] sm:$0xff] %vm1667, %v1594
      %1680 = vst.msk [vmem:[#allocation3 + $0x60] sm:$0xff] %vm1667, %v1596
      %1681 = vst.msk [vmem:[#allocation3 + $0x68] sm:$0xff] %vm1667, %v1598
      %1682 = vst.msk [vmem:[#allocation3 + $0x70] sm:$0xff] %vm1667, %v1600
      %1683 = vst.msk [vmem:[#allocation3 + $0x78] sm:$0xff] %vm1667, %v1602
      %1684 = vst.msk [vmem:[#allocation3 + $0x80] sm:$0xff] %vm1667, %v1604
      %1685 = vst.msk [vmem:[#allocation3 + $0x88] sm:$0xff] %vm1667, %v1606
      %1686 = vst.msk [vmem:[#allocation3 + $0x90] sm:$0xff] %vm1667, %v1608
      %1687 = vst.msk [vmem:[#allocation3 + $0x98] sm:$0xff] %vm1667, %v1610
      %1688 = vst.msk [vmem:[#allocation3 + $0xa0] sm:$0xff] %vm1667, %v1612
      %1689 = vst.msk [vmem:[#allocation3 + $0xa8] sm:$0xff] %vm1667, %v1614
      %1690 = vst.msk [vmem:[#allocation3 + $0xb0] sm:$0xff] %vm1667, %v1616
      %1691 = vst.msk [vmem:[#allocation3 + $0xb8] sm:$0xff] %vm1667, %v1618
      %1692 = vst.msk [vmem:[#allocation3 + $0xc0] sm:$0xff] %vm1667, %v1620
      %1693 = vst.msk [vmem:[#allocation3 + $0xc8] sm:$0xff] %vm1667, %v1622
      %1694 = vst.msk [vmem:[#allocation3 + $0xd0] sm:$0xff] %vm1667, %v1624
      %1695 = vst.msk [vmem:[#allocation3 + $0xd8] sm:$0xff] %vm1667, %v1626
      %1696 = vst.msk [vmem:[#allocation3 + $0xe0] sm:$0xff] %vm1667, %v1628
      %1697 = vst.msk [vmem:[#allocation3 + $0xe8] sm:$0xff] %vm1667, %v1630
      %1698 = vst.msk [vmem:[#allocation3 + $0xf0] sm:$0xff] %vm1667, %v1632
      %1699 = vst.msk [vmem:[#allocation3 + $0xf8] sm:$0xff] %vm1667, %v1634
      %v1700 = vld [vmem:[#allocation3] sm:$0xff]
      %v1701 = vld [vmem:[#allocation3 + $0x8] sm:$0xff]
      %v1702 = vld [vmem:[#allocation3 + $0x10] sm:$0xff]
      %v1703 = vld [vmem:[#allocation3 + $0x18] sm:$0xff]
      %v1704 = vld [vmem:[#allocation3 + $0x20] sm:$0xff]
      %v1705 = vld [vmem:[#allocation3 + $0x28] sm:$0xff]
      %v1706 = vld [vmem:[#allocation3 + $0x30] sm:$0xff]
      %v1707 = vld [vmem:[#allocation3 + $0x38] sm:$0xff]
      %v1708 = vld [vmem:[#allocation3 + $0x40] sm:$0xff]
      %v1709 = vld [vmem:[#allocation3 + $0x48] sm:$0xff]
      %v1710 = vld [vmem:[#allocation3 + $0x50] sm:$0xff]
      %v1711 = vld [vmem:[#allocation3 + $0x58] sm:$0xff]
      %v1712 = vld [vmem:[#allocation3 + $0x60] sm:$0xff]
      %v1713 = vld [vmem:[#allocation3 + $0x68] sm:$0xff]
      %v1714 = vld [vmem:[#allocation3 + $0x70] sm:$0xff]
      %v1715 = vld [vmem:[#allocation3 + $0x78] sm:$0xff]
      %v1716 = vld [vmem:[#allocation3 + $0x80] sm:$0xff]
      %v1717 = vld [vmem:[#allocation3 + $0x88] sm:$0xff]
      %v1718 = vld [vmem:[#allocation3 + $0x90] sm:$0xff]
      %v1719 = vld [vmem:[#allocation3 + $0x98] sm:$0xff]
      %v1720 = vld [vmem:[#allocation3 + $0xa0] sm:$0xff]
      %v1721 = vld [vmem:[#allocation3 + $0xa8] sm:$0xff]
      %v1722 = vld [vmem:[#allocation3 + $0xb0] sm:$0xff]
      %v1723 = vld [vmem:[#allocation3 + $0xb8] sm:$0xff]
      %v1724 = vld [vmem:[#allocation3 + $0xc0] sm:$0xff]
      %v1725 = vld [vmem:[#allocation3 + $0xc8] sm:$0xff]
      %v1726 = vld [vmem:[#allocation3 + $0xd0] sm:$0xff]
      %v1727 = vld [vmem:[#allocation3 + $0xd8] sm:$0xff]
      %v1728 = vld [vmem:[#allocation3 + $0xe0] sm:$0xff]
      %v1729 = vld [vmem:[#allocation3 + $0xe8] sm:$0xff]
      %v1730 = vld [vmem:[#allocation3 + $0xf0] sm:$0xff]
      %v1731 = vld [vmem:[#allocation3 + $0xf8] sm:$0xff]
      %v1732 = vld [vmem:[%s1] sm:$0xff]
      %v1733 = vld [vmem:[%s1 + $0x8] sm:$0xff]
      %v1734 = vld [vmem:[%s1 + $0x10] sm:$0xff]
      %v1735 = vld [vmem:[%s1 + $0x18] sm:$0xff]
      %v1736 = vld [vmem:[%s1 + $0x20] sm:$0xf]
      %v1737 = vld [vmem:[%s2] sm:$0x1]
      %v1739 = vlaneseq
      %v1740 = vshrl.u32 %v1739, 7
      %v1741 = vsub.s32 0, %v1740
      %v1742 = vrot.slane %v1737, %v1741
      %vm1744 = vcmask 293888
      %v1746 = vsel %vm1744, %v1700, 0
      %v1749 = vsel %vm1744, %v1701, 0
      %v1752 = vsel %vm1744, %v1702, 0
      %v1755 = vsel %vm1744, %v1703, 0
      %v1758 = vsel %vm1744, %v1704, 0
      %v1761 = vsel %vm1744, %v1705, 0
      %v1764 = vsel %vm1744, %v1706, 0
      %v1767 = vsel %vm1744, %v1707, 0
      %v1770 = vsel %vm1744, %v1708, 0
      %v1773 = vsel %vm1744, %v1709, 0
      %v1776 = vsel %vm1744, %v1710, 0
      %v1779 = vsel %vm1744, %v1711, 0
      %v1782 = vsel %vm1744, %v1712, 0
      %v1785 = vsel %vm1744, %v1713, 0
      %v1788 = vsel %vm1744, %v1714, 0
      %v1791 = vsel %vm1744, %v1715, 0
      %v1794 = vsel %vm1744, %v1716, 0
      %v1797 = vsel %vm1744, %v1717, 0
      %v1800 = vsel %vm1744, %v1718, 0
      %v1803 = vsel %vm1744, %v1719, 0
      %v1806 = vsel %vm1744, %v1720, 0
      %v1809 = vsel %vm1744, %v1721, 0
      %v1812 = vsel %vm1744, %v1722, 0
      %v1815 = vsel %vm1744, %v1723, 0
      %v1818 = vsel %vm1744, %v1724, 0
      %v1821 = vsel %vm1744, %v1725, 0
      %v1824 = vsel %vm1744, %v1726, 0
      %v1827 = vsel %vm1744, %v1727, 0
      %v1830 = vsel %vm1744, %v1728, 0
      %v1833 = vsel %vm1744, %v1729, 0
      %v1836 = vsel %vm1744, %v1730, 0
      %v1839 = vsel %vm1744, %v1731, 0
      %vm1841 = vcmask 1043456
      %v1843 = vsel %vm1841, %v1736, 0
      %1845 = vmatprep.subr.mxu0 0.0
      %1846 = vmatpush1.msra.mxu0 %v1732
      %1847 = vmatprep.subr.mxu0 0.0
      %1848 = vmatpush1.msra.mxu0 %v1733
      %1849 = vmatprep.subr.mxu0 0.0
      %1850 = vmatpush1.msra.mxu0 %v1734
      %1851 = vmatprep.subr.mxu0 0.0
      %1852 = vmatpush1.msra.mxu0 %v1735
      %1853 = vmatprep.subr.mxu0 0.0
      %1854 = vmatpush1.msra.mxu0 %v1843
      %1855 = vmatprep.subr.mxu0 0.0
      %1856 = vmatpush1.msra.mxu0 0.0
      %1857 = vmatprep.subr.mxu0 0.0
      %1858 = vmatpush1.msra.mxu0 0.0
      %1859 = vmatprep.subr.mxu0 0.0
      %1860 = vmatpush1.msra.mxu0 0.0
      %1861 = vmatprep.subr.mxu0 0.0
      %1862 = vmatpush1.msra.mxu0 0.0
      %1863 = vmatprep.subr.mxu0 0.0
      %1864 = vmatpush1.msra.mxu0 0.0
      %1865 = vmatprep.subr.mxu0 0.0
      %1866 = vmatpush1.msra.mxu0 0.0
      %1867 = vmatprep.subr.mxu0 0.0
      %1868 = vmatpush1.msra.mxu0 0.0
      %1869 = vmatprep.subr.mxu0 0.0
      %1870 = vmatpush1.msra.mxu0 0.0
      %1871 = vmatprep.subr.mxu0 0.0
      %1872 = vmatpush1.msra.mxu0 0.0
      %1873 = vmatprep.subr.mxu0 0.0
      %1874 = vmatpush1.msra.mxu0 0.0
      %1875 = vmatprep.subr.mxu0 0.0
      %1876 = vmatpush1.msra.mxu0 0.0
      %1877 = vmatprep.subr.mxu0 0.0
      %1878 = vmatpush1.msra.mxu0 0.0
      %1879 = vmatprep.subr.mxu0 0.0
      %1880 = vmatpush1.msra.mxu0 0.0
      %1881 = vmatprep.subr.mxu0 0.0
      %1882 = vmatpush1.msra.mxu0 0.0
      %1883 = vmatprep.subr.mxu0 0.0
      %1884 = vmatpush1.msra.mxu0 0.0
      %1885 = vmatprep.subr.mxu0 0.0
      %1886 = vmatpush1.msra.mxu0 0.0
      %1887 = vmatprep.subr.mxu0 0.0
      %1888 = vmatpush1.msra.mxu0 0.0
      %1889 = vmatprep.subr.mxu0 0.0
      %1890 = vmatpush1.msra.mxu0 0.0
      %1891 = vmatprep.subr.mxu0 0.0
      %1892 = vmatpush1.msra.mxu0 0.0
      %1893 = vmatprep.subr.mxu0 0.0
      %1894 = vmatpush1.msra.mxu0 0.0
      %1895 = vmatprep.subr.mxu0 0.0
      %1896 = vmatpush1.msra.mxu0 0.0
      %1897 = vmatprep.subr.mxu0 0.0
      %1898 = vmatpush1.msra.mxu0 0.0
      %1899 = vmatprep.subr.mxu0 0.0
      %1900 = vmatpush1.msra.mxu0 0.0
      %1901 = vmatprep.subr.mxu0 0.0
      %1902 = vmatpush1.msra.mxu0 0.0
      %1903 = vmatprep.subr.mxu0 0.0
      %1904 = vmatpush1.msra.mxu0 0.0
      %1905 = vmatprep.subr.mxu0 0.0
      %1906 = vmatpush1.msra.mxu0 0.0
      %1907 = vmatprep.subr.mxu0 0.0
      %1908 = vmatpush1.msra.mxu0 0.0
      %1909 = vmatprep.mubr.f32.mxu0 0.0
      %1910 = vmatmul.mubr.f32.gmra.mrb[0].mxu0 %v1746
      %v1911 = vpop.f32.mrb[0].mxu0
      %v1912 = vadd.f32 %v1742, %v1911
      %v1913 = vpop.f32.mrb[0].mxu0
      %1914 = vmatprep.mubr.f32.mxu0 0.0
      %1915 = vmatmul.mubr.f32.gmra.mrb[0].mxu0 %v1749
      %v1916 = vpop.f32.mrb[0].mxu0
      %v1917 = vadd.f32 %v1742, %v1916
      %v1918 = vpop.f32.mrb[0].mxu0
      %1919 = vmatprep.mubr.f32.mxu0 0.0
      %1920 = vmatmul.mubr.f32.gmra.mrb[0].mxu0 %v1752
      %v1921 = vpop.f32.mrb[0].mxu0
      %v1922 = vadd.f32 %v1742, %v1921
      %v1923 = vpop.f32.mrb[0].mxu0
      %1924 = vmatprep.mubr.f32.mxu0 0.0
      %1925 = vmatmul.mubr.f32.gmra.mrb[0].mxu0 %v1755
      %v1926 = vpop.f32.mrb[0].mxu0
      %v1927 = vadd.f32 %v1742, %v1926
      %v1928 = vpop.f32.mrb[0].mxu0
      %1929 = vmatprep.mubr.f32.mxu0 0.0
      %1930 = vmatmul.mubr.f32.gmra.mrb[0].mxu0 %v1758
      %v1931 = vpop.f32.mrb[0].mxu0
      %v1932 = vadd.f32 %v1742, %v1931
      %v1933 = vpop.f32.mrb[0].mxu0
      %1934 = vmatprep.mubr.f32.mxu0 0.0
      %1935 = vmatmul.mubr.f32.gmra.mrb[0].mxu0 %v1761
      %v1936 = vpop.f32.mrb[0].mxu0
      %v1937 = vadd.f32 %v1742, %v1936
      %v1938 = vpop.f32.mrb[0].mxu0
      %1939 = vmatprep.mubr.f32.mxu0 0.0
      %1940 = vmatmul.mubr.f32.gmra.mrb[0].mxu0 %v1764
      %v1941 = vpop.f32.mrb[0].mxu0
      %v1942 = vadd.f32 %v1742, %v1941
      %v1943 = vpop.f32.mrb[0].mxu0
      %1944 = vmatprep.mubr.f32.mxu0 0.0
      %1945 = vmatmul.mubr.f32.gmra.mrb[0].mxu0 %v1767
      %v1946 = vpop.f32.mrb[0].mxu0
      %v1947 = vadd.f32 %v1742, %v1946
      %v1948 = vpop.f32.mrb[0].mxu0
      %1949 = vmatprep.mubr.f32.mxu0 0.0
      %1950 = vmatmul.mubr.f32.gmra.mrb[0].mxu0 %v1770
      %v1951 = vpop.f32.mrb[0].mxu0
      %v1952 = vadd.f32 %v1742, %v1951
      %v1953 = vpop.f32.mrb[0].mxu0
      %1954 = vmatprep.mubr.f32.mxu0 0.0
      %1955 = vmatmul.mubr.f32.gmra.mrb[0].mxu0 %v1773
      %v1956 = vpop.f32.mrb[0].mxu0
      %v1957 = vadd.f32 %v1742, %v1956
      %v1958 = vpop.f32.mrb[0].mxu0
      %1959 = vmatprep.mubr.f32.mxu0 0.0
      %1960 = vmatmul.mubr.f32.gmra.mrb[0].mxu0 %v1776
      %v1961 = vpop.f32.mrb[0].mxu0
      %v1962 = vadd.f32 %v1742, %v1961
      %v1963 = vpop.f32.mrb[0].mxu0
      %1964 = vmatprep.mubr.f32.mxu0 0.0
      %1965 = vmatmul.mubr.f32.gmra.mrb[0].mxu0 %v1779
      %v1966 = vpop.f32.mrb[0].mxu0
      %v1967 = vadd.f32 %v1742, %v1966
      %v1968 = vpop.f32.mrb[0].mxu0
      %1969 = vmatprep.mubr.f32.mxu0 0.0
      %1970 = vmatmul.mubr.f32.gmra.mrb[0].mxu0 %v1782
      %v1971 = vpop.f32.mrb[0].mxu0
      %v1972 = vadd.f32 %v1742, %v1971
      %v1973 = vpop.f32.mrb[0].mxu0
      %1974 = vmatprep.mubr.f32.mxu0 0.0
      %1975 = vmatmul.mubr.f32.gmra.mrb[0].mxu0 %v1785
      %v1976 = vpop.f32.mrb[0].mxu0
      %v1977 = vadd.f32 %v1742, %v1976
      %v1978 = vpop.f32.mrb[0].mxu0
      %1979 = vmatprep.mubr.f32.mxu0 0.0
      %1980 = vmatmul.mubr.f32.gmra.mrb[0].mxu0 %v1788
      %v1981 = vpop.f32.mrb[0].mxu0
      %v1982 = vadd.f32 %v1742, %v1981
      %v1983 = vpop.f32.mrb[0].mxu0
      %1984 = vmatprep.mubr.f32.mxu0 0.0
      %1985 = vmatmul.mubr.f32.gmra.mrb[0].mxu0 %v1791
      %v1986 = vpop.f32.mrb[0].mxu0
      %v1987 = vadd.f32 %v1742, %v1986
      %v1988 = vpop.f32.mrb[0].mxu0
      %1989 = vmatprep.mubr.f32.mxu0 0.0
      %1990 = vmatmul.mubr.f32.gmra.mrb[0].mxu0 %v1794
      %v1991 = vpop.f32.mrb[0].mxu0
      %v1992 = vadd.f32 %v1742, %v1991
      %v1993 = vpop.f32.mrb[0].mxu0
      %1994 = vmatprep.mubr.f32.mxu0 0.0
      %1995 = vmatmul.mubr.f32.gmra.mrb[0].mxu0 %v1797
      %v1996 = vpop.f32.mrb[0].mxu0
      %v1997 = vadd.f32 %v1742, %v1996
      %v1998 = vpop.f32.mrb[0].mxu0
      %1999 = vmatprep.mubr.f32.mxu0 0.0
      %2000 = vmatmul.mubr.f32.gmra.mrb[0].mxu0 %v1800
      %v2001 = vpop.f32.mrb[0].mxu0
      %v2002 = vadd.f32 %v1742, %v2001
      %v2003 = vpop.f32.mrb[0].mxu0
      %2004 = vmatprep.mubr.f32.mxu0 0.0
      %2005 = vmatmul.mubr.f32.gmra.mrb[0].mxu0 %v1803
      %v2006 = vpop.f32.mrb[0].mxu0
      %v2007 = vadd.f32 %v1742, %v2006
      %v2008 = vpop.f32.mrb[0].mxu0
      %2009 = vmatprep.mubr.f32.mxu0 0.0
      %2010 = vmatmul.mubr.f32.gmra.mrb[0].mxu0 %v1806
      %v2011 = vpop.f32.mrb[0].mxu0
      %v2012 = vadd.f32 %v1742, %v2011
      %v2013 = vpop.f32.mrb[0].mxu0
      %2014 = vmatprep.mubr.f32.mxu0 0.0
      %2015 = vmatmul.mubr.f32.gmra.mrb[0].mxu0 %v1809
      %v2016 = vpop.f32.mrb[0].mxu0
      %v2017 = vadd.f32 %v1742, %v2016
      %v2018 = vpop.f32.mrb[0].mxu0
      %2019 = vmatprep.mubr.f32.mxu0 0.0
      %2020 = vmatmul.mubr.f32.gmra.mrb[0].mxu0 %v1812
      %v2021 = vpop.f32.mrb[0].mxu0
      %v2022 = vadd.f32 %v1742, %v2021
      %v2023 = vpop.f32.mrb[0].mxu0
      %2024 = vmatprep.mubr.f32.mxu0 0.0
      %2025 = vmatmul.mubr.f32.gmra.mrb[0].mxu0 %v1815
      %v2026 = vpop.f32.mrb[0].mxu0
      %v2027 = vadd.f32 %v1742, %v2026
      %v2028 = vpop.f32.mrb[0].mxu0
      %2029 = vmatprep.mubr.f32.mxu0 0.0
      %2030 = vmatmul.mubr.f32.gmra.mrb[0].mxu0 %v1818
      %v2031 = vpop.f32.mrb[0].mxu0
      %v2032 = vadd.f32 %v1742, %v2031
      %v2033 = vpop.f32.mrb[0].mxu0
      %2034 = vmatprep.mubr.f32.mxu0 0.0
      %2035 = vmatmul.mubr.f32.gmra.mrb[0].mxu0 %v1821
      %v2036 = vpop.f32.mrb[0].mxu0
      %v2037 = vadd.f32 %v1742, %v2036
      %v2038 = vpop.f32.mrb[0].mxu0
      %2039 = vmatprep.mubr.f32.mxu0 0.0
      %2040 = vmatmul.mubr.f32.gmra.mrb[0].mxu0 %v1824
      %v2041 = vpop.f32.mrb[0].mxu0
      %v2042 = vadd.f32 %v1742, %v2041
      %v2043 = vpop.f32.mrb[0].mxu0
      %2044 = vmatprep.mubr.f32.mxu0 0.0
      %2045 = vmatmul.mubr.f32.gmra.mrb[0].mxu0 %v1827
      %v2046 = vpop.f32.mrb[0].mxu0
      %v2047 = vadd.f32 %v1742, %v2046
      %v2048 = vpop.f32.mrb[0].mxu0
      %2049 = vmatprep.mubr.f32.mxu0 0.0
      %2050 = vmatmul.mubr.f32.gmra.mrb[0].mxu0 %v1830
      %v2051 = vpop.f32.mrb[0].mxu0
      %v2052 = vadd.f32 %v1742, %v2051
      %v2053 = vpop.f32.mrb[0].mxu0
      %2054 = vmatprep.mubr.f32.mxu0 0.0
      %2055 = vmatmul.mubr.f32.gmra.mrb[0].mxu0 %v1833
      %v2056 = vpop.f32.mrb[0].mxu0
      %v2057 = vadd.f32 %v1742, %v2056
      %v2058 = vpop.f32.mrb[0].mxu0
      %2059 = vmatprep.mubr.f32.mxu0 0.0
      %2060 = vmatmul.mubr.f32.gmra.mrb[0].mxu0 %v1836
      %v2061 = vpop.f32.mrb[0].mxu0
      %v2062 = vadd.f32 %v1742, %v2061
      %v2063 = vpop.f32.mrb[0].mxu0
      %2064 = vmatprep.mubr.f32.mxu0 0.0
      %2065 = vmatmul.mubr.f32.gmra.mrb[0].mxu0 %v1839
      %v2066 = vpop.f32.mrb[0].mxu0
      %v2067 = vadd.f32 %v1742, %v2066
      %v2068 = vpop.f32.mrb[0].mxu0
      %2069 = vdwg.mxu0
      %vm2070 = vcmask 64512
      %v2071 = vsel %vm2070, %v1912, 0.0
      %v2072 = vsel %vm2070, %v1917, 0.0
      %v2073 = vadd.f32 %v2071, %v2072
      %v2074 = vsel %vm2070, %v1922, 0.0
      %v2075 = vadd.f32 %v2073, %v2074
      %v2076 = vsel %vm2070, %v1927, 0.0
      %v2077 = vadd.f32 %v2075, %v2076
      %v2078 = vsel %vm2070, %v1932, 0.0
      %v2079 = vadd.f32 %v2077, %v2078
      %v2080 = vsel %vm2070, %v1937, 0.0
      %v2081 = vadd.f32 %v2079, %v2080
      %v2082 = vsel %vm2070, %v1942, 0.0
      %v2083 = vadd.f32 %v2081, %v2082
      %v2084 = vsel %vm2070, %v1947, 0.0
      %v2085 = vadd.f32 %v2083, %v2084
      %v2086 = vsel %vm2070, %v1952, 0.0
      %v2087 = vadd.f32 %v2085, %v2086
      %v2088 = vsel %vm2070, %v1957, 0.0
      %v2089 = vadd.f32 %v2087, %v2088
      %v2090 = vsel %vm2070, %v1962, 0.0
      %v2091 = vadd.f32 %v2089, %v2090
      %v2092 = vsel %vm2070, %v1967, 0.0
      %v2093 = vadd.f32 %v2091, %v2092
      %v2094 = vsel %vm2070, %v1972, 0.0
      %v2095 = vadd.f32 %v2093, %v2094
      %v2096 = vsel %vm2070, %v1977, 0.0
      %v2097 = vadd.f32 %v2095, %v2096
      %v2098 = vsel %vm2070, %v1982, 0.0
      %v2099 = vadd.f32 %v2097, %v2098
      %v2100 = vsel %vm2070, %v1987, 0.0
      %v2101 = vadd.f32 %v2099, %v2100
      %v2102 = vsel %vm2070, %v1992, 0.0
      %v2103 = vadd.f32 %v2101, %v2102
      %v2104 = vsel %vm2070, %v1997, 0.0
      %v2105 = vadd.f32 %v2103, %v2104
      %v2106 = vsel %vm2070, %v2002, 0.0
      %v2107 = vadd.f32 %v2105, %v2106
      %v2108 = vsel %vm2070, %v2007, 0.0
      %v2109 = vadd.f32 %v2107, %v2108
      %v2110 = vsel %vm2070, %v2012, 0.0
      %v2111 = vadd.f32 %v2109, %v2110
      %v2112 = vsel %vm2070, %v2017, 0.0
      %v2113 = vadd.f32 %v2111, %v2112
      %v2114 = vsel %vm2070, %v2022, 0.0
      %v2115 = vadd.f32 %v2113, %v2114
      %v2116 = vsel %vm2070, %v2027, 0.0
      %v2117 = vadd.f32 %v2115, %v2116
      %v2118 = vsel %vm2070, %v2032, 0.0
      %v2119 = vadd.f32 %v2117, %v2118
      %v2120 = vsel %vm2070, %v2037, 0.0
      %v2121 = vadd.f32 %v2119, %v2120
      %v2122 = vsel %vm2070, %v2042, 0.0
      %v2123 = vadd.f32 %v2121, %v2122
      %v2124 = vsel %vm2070, %v2047, 0.0
      %v2125 = vadd.f32 %v2123, %v2124
      %v2126 = vsel %vm2070, %v2052, 0.0
      %v2127 = vadd.f32 %v2125, %v2126
      %v2128 = vsel %vm2070, %v2057, 0.0
      %v2129 = vadd.f32 %v2127, %v2128
      %v2130 = vsel %vm2070, %v2062, 0.0
      %v2131 = vadd.f32 %v2129, %v2130
      %v2132 = vsel %vm2070, %v2067, 0.0
      %v2133 = vadd.f32 %v2131, %v2132
      %v2134 = vrot.slane %v2133, 4
      %v2135 = vadd.f32 %v2133, %v2134
      %v2136 = vrot.slane %v2135, 2
      %v2137 = vadd.f32 %v2135, %v2136
      %v2138 = vrot.slane %v2137, 1
      %v2139 = vadd.f32 %v2137, %v2138
      %v2140 = vmul.f32 %v1912, %v1912
      %v2141 = vmul.f32 %v1917, %v1917
      %v2142 = vmul.f32 %v1922, %v1922
      %v2143 = vmul.f32 %v1927, %v1927
      %v2144 = vmul.f32 %v1932, %v1932
      %v2145 = vmul.f32 %v1937, %v1937
      %v2146 = vmul.f32 %v1942, %v1942
      %v2147 = vmul.f32 %v1947, %v1947
      %v2148 = vmul.f32 %v1952, %v1952
      %v2149 = vmul.f32 %v1957, %v1957
      %v2150 = vmul.f32 %v1962, %v1962
      %v2151 = vmul.f32 %v1967, %v1967
      %v2152 = vmul.f32 %v1972, %v1972
      %v2153 = vmul.f32 %v1977, %v1977
      %v2154 = vmul.f32 %v1982, %v1982
      %v2155 = vmul.f32 %v1987, %v1987
      %v2156 = vmul.f32 %v1992, %v1992
      %v2157 = vmul.f32 %v1997, %v1997
      %v2158 = vmul.f32 %v2002, %v2002
      %v2159 = vmul.f32 %v2007, %v2007
      %v2160 = vmul.f32 %v2012, %v2012
      %v2161 = vmul.f32 %v2017, %v2017
      %v2162 = vmul.f32 %v2022, %v2022
      %v2163 = vmul.f32 %v2027, %v2027
      %v2164 = vmul.f32 %v2032, %v2032
      %v2165 = vmul.f32 %v2037, %v2037
      %v2166 = vmul.f32 %v2042, %v2042
      %v2167 = vmul.f32 %v2047, %v2047
      %v2168 = vmul.f32 %v2052, %v2052
      %v2169 = vmul.f32 %v2057, %v2057
      %v2170 = vmul.f32 %v2062, %v2062
      %v2171 = vmul.f32 %v2067, %v2067
      %v2172 = vsel %vm2070, %v2140, 0.0
      %v2173 = vsel %vm2070, %v2141, 0.0
      %v2174 = vadd.f32 %v2172, %v2173
      %v2175 = vsel %vm2070, %v2142, 0.0
      %v2176 = vadd.f32 %v2174, %v2175
      %v2177 = vsel %vm2070, %v2143, 0.0
      %v2178 = vadd.f32 %v2176, %v2177
      %v2179 = vsel %vm2070, %v2144, 0.0
      %v2180 = vadd.f32 %v2178, %v2179
      %v2181 = vsel %vm2070, %v2145, 0.0
      %v2182 = vadd.f32 %v2180, %v2181
      %v2183 = vsel %vm2070, %v2146, 0.0
      %v2184 = vadd.f32 %v2182, %v2183
      %v2185 = vsel %vm2070, %v2147, 0.0
      %v2186 = vadd.f32 %v2184, %v2185
      %v2187 = vsel %vm2070, %v2148, 0.0
      %v2188 = vadd.f32 %v2186, %v2187
      %v2189 = vsel %vm2070, %v2149, 0.0
      %v2190 = vadd.f32 %v2188, %v2189
      %v2191 = vsel %vm2070, %v2150, 0.0
      %v2192 = vadd.f32 %v2190, %v2191
      %v2193 = vsel %vm2070, %v2151, 0.0
      %v2194 = vadd.f32 %v2192, %v2193
      %v2195 = vsel %vm2070, %v2152, 0.0
      %v2196 = vadd.f32 %v2194, %v2195
      %v2197 = vsel %vm2070, %v2153, 0.0
      %v2198 = vadd.f32 %v2196, %v2197
      %v2199 = vsel %vm2070, %v2154, 0.0
      %v2200 = vadd.f32 %v2198, %v2199
      %v2201 = vsel %vm2070, %v2155, 0.0
      %v2202 = vadd.f32 %v2200, %v2201
      %v2203 = vsel %vm2070, %v2156, 0.0
      %v2204 = vadd.f32 %v2202, %v2203
      %v2205 = vsel %vm2070, %v2157, 0.0
      %v2206 = vadd.f32 %v2204, %v2205
      %v2207 = vsel %vm2070, %v2158, 0.0
      %v2208 = vadd.f32 %v2206, %v2207
      %v2209 = vsel %vm2070, %v2159, 0.0
      %v2210 = vadd.f32 %v2208, %v2209
      %v2211 = vsel %vm2070, %v2160, 0.0
      %v2212 = vadd.f32 %v2210, %v2211
      %v2213 = vsel %vm2070, %v2161, 0.0
      %v2214 = vadd.f32 %v2212, %v2213
      %v2215 = vsel %vm2070, %v2162, 0.0
      %v2216 = vadd.f32 %v2214, %v2215
      %v2217 = vsel %vm2070, %v2163, 0.0
      %v2218 = vadd.f32 %v2216, %v2217
      %v2219 = vsel %vm2070, %v2164, 0.0
      %v2220 = vadd.f32 %v2218, %v2219
      %v2221 = vsel %vm2070, %v2165, 0.0
      %v2222 = vadd.f32 %v2220, %v2221
      %v2223 = vsel %vm2070, %v2166, 0.0
      %v2224 = vadd.f32 %v2222, %v2223
      %v2225 = vsel %vm2070, %v2167, 0.0
      %v2226 = vadd.f32 %v2224, %v2225
      %v2227 = vsel %vm2070, %v2168, 0.0
      %v2228 = vadd.f32 %v2226, %v2227
      %v2229 = vsel %vm2070, %v2169, 0.0
      %v2230 = vadd.f32 %v2228, %v2229
      %v2231 = vsel %vm2070, %v2170, 0.0
      %v2232 = vadd.f32 %v2230, %v2231
      %v2233 = vsel %vm2070, %v2171, 0.0
      %v2234 = vadd.f32 %v2232, %v2233
      %v2235 = vrot.slane %v2234, 4
      %v2236 = vadd.f32 %v2234, %v2235
      %v2237 = vrot.slane %v2236, 2
      %v2238 = vadd.f32 %v2236, %v2237
      %v2239 = vrot.slane %v2238, 1
      %v2240 = vadd.f32 %v2238, %v2239
      %v2241 = vlaneseq
      %v2242 = vand.u32 %v2241, 127
      %vm2243 = vcmp.ge.s32.totalorder %v2242, 0
      %vm2244 = vcmp.lt.s32.totalorder %v2242, 4
      %vm2245 = vmand %vm2243, %vm2244
      %v2246 = vsel %vm2245, %v2139, 0.0
      %vm2247 = vcmask 57344
      %v2248 = vsel %vm2247, %v2246, 0.0
      %2249 = vadd.xlane.f32.xlu0 %v2248
      %v2250 = vpop.xlane.xlu0 %2249
      %v2251 = vrot.slane %v2250, 4
      %v2252 = vadd.f32 %v2250, %v2251
      %v2253 = vrot.slane %v2252, 2
      %v2254 = vadd.f32 %v2252, %v2253
      %v2255 = vrot.slane %v2254, 1
      %v2256 = vadd.f32 %v2254, %v2255
      %s2257 = vtos %v2256
      %v2258 = vrcp.pop 1024.0
      %s2259 = vtos %v2258
      %s2260 = smul.f32 %s2257, %s2259
      %v2261 = vsel %vm2245, %v2240, 0.0
      %v2262 = vsel %vm2247, %v2261, 0.0
      %2263 = vadd.xlane.f32.xlu0 %v2262
      %v2264 = vpop.xlane.xlu0 %2263
      %v2265 = vrot.slane %v2264, 4
      %v2266 = vadd.f32 %v2264, %v2265
      %v2267 = vrot.slane %v2266, 2
      %v2268 = vadd.f32 %v2266, %v2267
      %v2269 = vrot.slane %v2268, 1
      %v2270 = vadd.f32 %v2268, %v2269
      %s2271 = vtos %v2270
      %v2272 = vrcp.pop 1024.0
      %s2273 = vtos %v2272
      %s2274 = smul.f32 %s2271, %s2273
      %v2275 = vstv %s2260
      %v2276 = vsel %vm2245, %v2275, 0.0
      %v2277 = vstv %s2274
      %v2278 = vsel %vm2245, %v2277, 0.0
      %vm2279 = vcmp.ge.s32.totalorder %v2242, 4
      %vm2280 = vcmp.lt.s32.totalorder %v2242, 8
      %vm2281 = vmand %vm2279, %vm2280
      %v2282 = vsel %vm2281, %v2139, 0.0
      %v2283 = vsel %vm2247, %v2282, 0.0
      %2284 = vadd.xlane.f32.xlu0 %v2283
      %v2285 = vpop.xlane.xlu0 %2284
      %v2286 = vrot.slane %v2285, 4
      %v2287 = vadd.f32 %v2285, %v2286
      %v2288 = vrot.slane %v2287, 2
      %v2289 = vadd.f32 %v2287, %v2288
      %v2290 = vrot.slane %v2289, 1
      %v2291 = vadd.f32 %v2289, %v2290
      %s2292 = vtos %v2291
      %v2293 = vrcp.pop 1024.0
      %s2294 = vtos %v2293
      %s2295 = smul.f32 %s2292, %s2294
      %v2296 = vsel %vm2281, %v2240, 0.0
      %v2297 = vsel %vm2247, %v2296, 0.0
      %2298 = vadd.xlane.f32.xlu0 %v2297
      %v2299 = vpop.xlane.xlu0 %2298
      %v2300 = vrot.slane %v2299, 4
      %v2301 = vadd.f32 %v2299, %v2300
      %v2302 = vrot.slane %v2301, 2
      %v2303 = vadd.f32 %v2301, %v2302
      %v2304 = vrot.slane %v2303, 1
      %v2305 = vadd.f32 %v2303, %v2304
      %s2306 = vtos %v2305
      %v2307 = vrcp.pop 1024.0
      %s2308 = vtos %v2307
      %s2309 = smul.f32 %s2306, %s2308
      %v2310 = vstv %s2295
      %v2311 = vsel %vm2281, %v2310, %v2276
      %v2312 = vstv %s2309
      %v2313 = vsel %vm2281, %v2312, %v2278
      %v2314 = vmul.f32 %v2311, %v2311
      %v2315 = vsub.f32 %v2313, %v2314
      %v2316 = vmax.f32 %v2315, 0.0
      %v2317 = vadd.f32 %v2316, 1e-05
      %v2318 = vrsqrt.pop %v2317
      %v2319 = vsub.f32 %v1912, %v2311
      %v2320 = vsub.f32 %v1917, %v2311
      %v2321 = vsub.f32 %v1922, %v2311
      %v2322 = vsub.f32 %v1927, %v2311
      %v2323 = vsub.f32 %v1932, %v2311
      %v2324 = vsub.f32 %v1937, %v2311
      %v2325 = vsub.f32 %v1942, %v2311
      %v2326 = vsub.f32 %v1947, %v2311
      %v2327 = vsub.f32 %v1952, %v2311
      %v2328 = vsub.f32 %v1957, %v2311
      %v2329 = vsub.f32 %v1962, %v2311
      %v2330 = vsub.f32 %v1967, %v2311
      %v2331 = vsub.f32 %v1972, %v2311
      %v2332 = vsub.f32 %v1977, %v2311
      %v2333 = vsub.f32 %v1982, %v2311
      %v2334 = vsub.f32 %v1987, %v2311
      %v2335 = vsub.f32 %v1992, %v2311
      %v2336 = vsub.f32 %v1997, %v2311
      %v2337 = vsub.f32 %v2002, %v2311
      %v2338 = vsub.f32 %v2007, %v2311
      %v2339 = vsub.f32 %v2012, %v2311
      %v2340 = vsub.f32 %v2017, %v2311
      %v2341 = vsub.f32 %v2022, %v2311
      %v2342 = vsub.f32 %v2027, %v2311
      %v2343 = vsub.f32 %v2032, %v2311
      %v2344 = vsub.f32 %v2037, %v2311
      %v2345 = vsub.f32 %v2042, %v2311
      %v2346 = vsub.f32 %v2047, %v2311
      %v2347 = vsub.f32 %v2052, %v2311
      %v2348 = vsub.f32 %v2057, %v2311
      %v2349 = vsub.f32 %v2062, %v2311
      %v2350 = vsub.f32 %v2067, %v2311
      %v2351 = vld [vmem:[%s3] sm:$0x1]
      %v2352 = vmul.f32 %v2318, %v2351
      %v2353 = vlaneseq
      %v2354 = vshrl.u32 %v2353, 7
      %v2355 = vsub.s32 0, %v2354
      %v2356 = vrot.slane %v2352, %v2355
      %v2357 = vmul.f32 %v2319, %v2356
      %v2358 = vmul.f32 %v2320, %v2356
      %v2359 = vmul.f32 %v2321, %v2356
      %v2360 = vmul.f32 %v2322, %v2356
      %v2361 = vmul.f32 %v2323, %v2356
      %v2362 = vmul.f32 %v2324, %v2356
      %v2363 = vmul.f32 %v2325, %v2356
      %v2364 = vmul.f32 %v2326, %v2356
      %v2365 = vmul.f32 %v2327, %v2356
      %v2366 = vmul.f32 %v2328, %v2356
      %v2367 = vmul.f32 %v2329, %v2356
      %v2368 = vmul.f32 %v2330, %v2356
      %v2369 = vmul.f32 %v2331, %v2356
      %v2370 = vmul.f32 %v2332, %v2356
      %v2371 = vmul.f32 %v2333, %v2356
      %v2372 = vmul.f32 %v2334, %v2356
      %v2373 = vmul.f32 %v2335, %v2356
      %v2374 = vmul.f32 %v2336, %v2356
      %v2375 = vmul.f32 %v2337, %v2356
      %v2376 = vmul.f32 %v2338, %v2356
      %v2377 = vmul.f32 %v2339, %v2356
      %v2378 = vmul.f32 %v2340, %v2356
      %v2379 = vmul.f32 %v2341, %v2356
      %v2380 = vmul.f32 %v2342, %v2356
      %v2381 = vmul.f32 %v2343, %v2356
      %v2382 = vmul.f32 %v2344, %v2356
      %v2383 = vmul.f32 %v2345, %v2356
      %v2384 = vmul.f32 %v2346, %v2356
      %v2385 = vmul.f32 %v2347, %v2356
      %v2386 = vmul.f32 %v2348, %v2356
      %v2387 = vmul.f32 %v2349, %v2356
      %v2388 = vmul.f32 %v2350, %v2356
      %v2389 = vld [vmem:[%s4] sm:$0x1]
      %v2391 = vlaneseq
      %v2392 = vshrl.u32 %v2391, 7
      %v2393 = vsub.s32 0, %v2392
      %v2394 = vrot.slane %v2389, %v2393
      %v2396 = vadd.f32 %v2357, %v2394
      %v2397 = vadd.f32 %v2358, %v2394
      %v2398 = vadd.f32 %v2359, %v2394
      %v2399 = vadd.f32 %v2360, %v2394
      %v2400 = vadd.f32 %v2361, %v2394
      %v2401 = vadd.f32 %v2362, %v2394
      %v2402 = vadd.f32 %v2363, %v2394
      %v2403 = vadd.f32 %v2364, %v2394
      %v2404 = vadd.f32 %v2365, %v2394
      %v2405 = vadd.f32 %v2366, %v2394
      %v2406 = vadd.f32 %v2367, %v2394
      %v2407 = vadd.f32 %v2368, %v2394
      %v2408 = vadd.f32 %v2369, %v2394
      %v2409 = vadd.f32 %v2370, %v2394
      %v2410 = vadd.f32 %v2371, %v2394
      %v2411 = vadd.f32 %v2372, %v2394
      %v2412 = vadd.f32 %v2373, %v2394
      %v2413 = vadd.f32 %v2374, %v2394
      %v2414 = vadd.f32 %v2375, %v2394
      %v2415 = vadd.f32 %v2376, %v2394
      %v2416 = vadd.f32 %v2377, %v2394
      %v2417 = vadd.f32 %v2378, %v2394
      %v2418 = vadd.f32 %v2379, %v2394
      %v2419 = vadd.f32 %v2380, %v2394
      %v2420 = vadd.f32 %v2381, %v2394
      %v2421 = vadd.f32 %v2382, %v2394
      %v2422 = vadd.f32 %v2383, %v2394
      %v2423 = vadd.f32 %v2384, %v2394
      %v2424 = vadd.f32 %v2385, %v2394
      %v2425 = vadd.f32 %v2386, %v2394
      %v2426 = vadd.f32 %v2387, %v2394
      %v2427 = vadd.f32 %v2388, %v2394
      %2428 = vst.msk [vmem:[%s224] sm:$0xff] %vm2070, %v2396
      %2429 = vst.msk [vmem:[%s224 + $0x8] sm:$0xff] %vm2070, %v2397
      %2430 = vst.msk [vmem:[%s224 + $0x10] sm:$0xff] %vm2070, %v2398
      %2431 = vst.msk [vmem:[%s224 + $0x18] sm:$0xff] %vm2070, %v2399
      %2432 = vst.msk [vmem:[%s224 + $0x20] sm:$0xff] %vm2070, %v2400
      %2433 = vst.msk [vmem:[%s224 + $0x28] sm:$0xff] %vm2070, %v2401
      %2434 = vst.msk [vmem:[%s224 + $0x30] sm:$0xff] %vm2070, %v2402
      %2435 = vst.msk [vmem:[%s224 + $0x38] sm:$0xff] %vm2070, %v2403
      %2436 = vst.msk [vmem:[%s224 + $0x40] sm:$0xff] %vm2070, %v2404
      %2437 = vst.msk [vmem:[%s224 + $0x48] sm:$0xff] %vm2070, %v2405
      %2438 = vst.msk [vmem:[%s224 + $0x50] sm:$0xff] %vm2070, %v2406
      %2439 = vst.msk [vmem:[%s224 + $0x58] sm:$0xff] %vm2070, %v2407
      %2440 = vst.msk [vmem:[%s224 + $0x60] sm:$0xff] %vm2070, %v2408
      %2441 = vst.msk [vmem:[%s224 + $0x68] sm:$0xff] %vm2070, %v2409
      %2442 = vst.msk [vmem:[%s224 + $0x70] sm:$0xff] %vm2070, %v2410
      %2443 = vst.msk [vmem:[%s224 + $0x78] sm:$0xff] %vm2070, %v2411
      %2444 = vst.msk [vmem:[%s224 + $0x80] sm:$0xff] %vm2070, %v2412
      %2445 = vst.msk [vmem:[%s224 + $0x88] sm:$0xff] %vm2070, %v2413
      %2446 = vst.msk [vmem:[%s224 + $0x90] sm:$0xff] %vm2070, %v2414
      %2447 = vst.msk [vmem:[%s224 + $0x98] sm:$0xff] %vm2070, %v2415
      %2448 = vst.msk [vmem:[%s224 + $0xa0] sm:$0xff] %vm2070, %v2416
      %2449 = vst.msk [vmem:[%s224 + $0xa8] sm:$0xff] %vm2070, %v2417
      %2450 = vst.msk [vmem:[%s224 + $0xb0] sm:$0xff] %vm2070, %v2418
      %2451 = vst.msk [vmem:[%s224 + $0xb8] sm:$0xff] %vm2070, %v2419
      %2452 = vst.msk [vmem:[%s224 + $0xc0] sm:$0xff] %vm2070, %v2420
      %2453 = vst.msk [vmem:[%s224 + $0xc8] sm:$0xff] %vm2070, %v2421
      %2454 = vst.msk [vmem:[%s224 + $0xd0] sm:$0xff] %vm2070, %v2422
      %2455 = vst.msk [vmem:[%s224 + $0xd8] sm:$0xff] %vm2070, %v2423
      %2456 = vst.msk [vmem:[%s224 + $0xe0] sm:$0xff] %vm2070, %v2424
      %2457 = vst.msk [vmem:[%s224 + $0xe8] sm:$0xff] %vm2070, %v2425
      %2458 = vst.msk [vmem:[%s224 + $0xf0] sm:$0xff] %vm2070, %v2426
      %2459 = vst.msk [vmem:[%s224 + $0xf8] sm:$0xff] %vm2070, %v2427
      %p2460 = scmp.lt.s32.totalorder %s16, 1
      %s2461 = scalar_select %p2460, %s16, 1
      %s2462 = smul.addr %s2461, 32
      %s2463 = smul.addr %s2462, 8
      %s2464 = scalar_lea.vmem %s5, %s2463
      // Predicated region
      $region41: #{tpu_custom_call.1} parent=39 // pred_check
        %p2465 = pneg %p144
      $region42: #{tpu_custom_call.1} parent=39 // pred_check_branch
        %2467 = sbr.rel (%p2465) target = $region44
      $region43: #{tpu_custom_call.1} parent=39 // pred_region
        _
      $region44: #{tpu_custom_call.1} parent=39 // pred_fallthru
        _
    $region40: #{tpu_custom_call.1} parent=5 // pred_fallthru
      _
    %p2468 = scmp.le.s32.totalorder 2, %s11
    // Predicated region
    $region45: #{tpu_custom_call.1} parent=5 // pred_check
      %p2469 = pneg %p2468
    $region46: #{tpu_custom_call.1} parent=5 // pred_check_branch
      %2471 = sbr.rel (%p2469) target = $region48
    $region47: #{tpu_custom_call.1} parent=5 // pred_region
      %s2472 = ssub.s32 %s11, 2
      // Predicated region
      $region49: #{tpu_custom_call.1} parent=47 // pred_check
        %p2473 = pneg %p150
      $region50: #{tpu_custom_call.1} parent=47 // pred_check_branch
        %2475 = sbr.rel (%p2473) target = $region52
      $region51: #{tpu_custom_call.1} parent=47 // pred_region
        %p2476 = scmp.lt.s32.totalorder %s17, 1
        %s2477 = scalar_select %p2476, %s17, 1
        %s2478 = smul.addr %s2477, 32
        %s2479 = smul.addr %s2478, 8
        %s2480 = scalar_lea.vmem %s5, %s2479
      $region52: #{tpu_custom_call.1} parent=47 // pred_fallthru
        _
    $region48: #{tpu_custom_call.1} parent=5 // pred_fallthru
      _
  $region6: #{tpu_custom_call.1} parent=0 // loop_footer
    %s15 = sadd.s32 1, %s11
  $region7: #{tpu_custom_call.1} parent=0 // loop_footer_branch
    %10 = sbr.rel target = $region3
  $region8: #{tpu_custom_call.1} parent=0 // loop_exit
    _

</llo_original>
